<compile_context>
chip_gen: v7x
topology: tpu7x:2x2x1
jax: 0.10.0
libtpu: 0.0.40
codegen_flags: <defaults>
</compile_context>

<pallas_src>
import functools

import jax
import jax.numpy as jnp
from jax.experimental import pallas as pl
from jax.experimental.pallas import tpu as pltpu

RMS_EPS = 1e-6  # TODO(synk): custom RMSNorm eps not given in the source; assuming 1e-6.
LANE = 128


def _rup(n, m=LANE):
    return ((n + m - 1) // m) * m


def _pick_bt(B, L):
    """Largest divisor of B keeping the matmul M dim (Bt*L rows) <= 1024."""
    best = 1
    for bt in range(1, B + 1):
        if B % bt == 0 and bt * L <= 1024:
            best = bt
    return best


# ----------------------------------------------------------------------------
# Fused Pallas kernel: the entire ConvBlockDecoder stack for a (Bt, L, C) tile
# ----------------------------------------------------------------------------
def _cnn_decoder_kernel(*args, n_blocks, couts, eps, apply_dropout, p_thresh):
    per = 7 if apply_dropout else 6
    x_ref = args[0]
    o_ref = args[-1]

    Bt, L, _ = x_ref.shape
    M = Bt * L
    t_idx = jax.lax.broadcasted_iota(jnp.int32, (Bt, L, 1), 1)

    def shifted(v, d):
        # rows t -> v[t + d] within each batch element, zeros outside [0, L)
        if d == 0:
            return v
        r = jnp.roll(v, shift=-d, axis=1)          # rotate, no padded buffer copies
        valid = jnp.logical_and(t_idx + d >= 0, t_idx + d < L)
        return jnp.where(valid, r, jnp.zeros_like(r))

    h = x_ref[...]                                  # (Bt, L, Cip0) bf16, channel-padded
    for b in range(n_blocks):
        base = 1 + b * per
        w1_ref, g1_ref, w2_ref, b2_ref, g2_ref, rb2_ref = args[base:base + 6]
        Cout = couts[b]
        Cip = h.shape[2]
        Cop = w1_ref.shape[1]

        # --- ConvTranspose1d(k=3, stride=1, padding=1, bias=False) ------------
        # out[t] = sum_{d in -1..1} x[t+d] @ W1[:, :, 1-d]  ->  single matmul
        cols1 = jnp.concatenate([shifted(h, d) for d in (-1, 0, 1)], axis=-1)
        y1 = jnp.dot(cols1.reshape(M, 3 * Cip), w1_ref[...],
                     preferred_element_type=jnp.float32)        # (M, Cop) f32

        # --- RMSNorm over channels (zero-padded channels contribute nothing) --
        inv1 = jax.lax.rsqrt(jnp.sum(y1 * y1, axis=-1, keepdims=True) * (1.0 / Cout) + eps)
        y1n = y1 * inv1 * g1_ref[...]

        # --- SiLU --------------------------------------------------------------
        a = (y1n * jax.nn.sigmoid(y1n)).astype(jnp.bfloat16).reshape(Bt, L, Cop)

        # --- ConvTranspose1d(k=5, stride=1, padding=2, bias=True) -------------
        cols2 = jnp.concatenate([shifted(a, d) for d in (-2, -1, 0, 1, 2)], axis=-1)
        y2 = jnp.dot(cols2.reshape(M, 5 * Cop), w2_ref[...],
                     preferred_element_type=jnp.float32) + b2_ref[...]

        # --- RMSNorm (bias=True); dropout's 1/(1-p) scale pre-folded into g2/rb2
        inv2 = jax.lax.rsqrt(jnp.sum(y2 * y2, axis=-1, keepdims=True) * (1.0 / Cout) + eps)
        z = y2 * inv2 * g2_ref[...] + rb2_ref[...]

        # --- Dropout (F.dropout default training=True) -------------------------
        # TODO(synk): torch's RNG stream cannot be reproduced; Bernoulli keep
        # mask comes from host-side jax.random bits vs. an int32 threshold.
        if apply_dropout:
            rnd_ref = args[base + 6]
            keep = rnd_ref[...].reshape(M, Cop) >= p_thresh
            z = jnp.where(keep, z, 0.0)

        h = z.astype(jnp.bfloat16).reshape(Bt, L, Cop)

    o_ref[...] = h.astype(o_ref.dtype)


# ----------------------------------------------------------------------------
# Wrapper: prepares padded im2col weights, dropout bits, one pallas_call total
# ----------------------------------------------------------------------------
def cnn_decoder(x, block_params, *, p_drop=0.2, eps=RMS_EPS,
                apply_dropout=True, rng_key=None):
    """x: (B, L, channels[0]) channel-last. Returns (B, L, channels[-1])."""
    B, L, C0 = x.shape
    n_blocks = len(block_params)
    C0p = _rup(C0)
    xp = jnp.pad(x, ((0, 0), (0, 0), (0, C0p - C0))).astype(jnp.bfloat16)

    drop_scale = 1.0 / (1.0 - p_drop) if apply_dropout else 1.0
    if apply_dropout and rng_key is None:
        rng_key = jax.random.PRNGKey(0)
    keys = (list(jax.random.split(rng_key, n_blocks)) if apply_dropout
            else [None] * n_blocks)

    Bt = _pick_bt(B, L)
    grid = (B // Bt,)

    inputs = [xp]
    in_specs = [pl.BlockSpec((Bt, L, C0p), lambda i: (i, 0, 0))]

    couts = []
    cin_p = C0p
    for params, key in zip(block_params, keys):
        W1, W2 = params["w1"], params["w2"]        # torch layouts (Cin,Cout,3)/(Cout,Cout,5)
        Cin, Cout = W1.shape[0], W1.shape[1]
        Cip, Cop = _rup(Cin), _rup(Cout)
        assert Cip == cin_p
        couts.append(Cout)

        # Per-tap matrices stacked along K (im2col): input offset d <-> tap k = pad - d
        W1p = jnp.pad(W1, ((0, Cip - Cin), (0, Cop - Cout), (0, 0)))
        W1f = jnp.concatenate([W1p[:, :, 1 - d] for d in (-1, 0, 1)],
                              axis=0).astype(jnp.bfloat16)       # (3*Cip, Cop)
        W2p = jnp.pad(W2, ((0, Cop - Cout), (0, Cop - Cout), (0, 0)))
        W2f = jnp.concatenate([W2p[:, :, 2 - d] for d in (-2, -1, 0, 1, 2)],
                              axis=0).astype(jnp.bfloat16)       # (5*Cop, Cop)

        def _vec(v, scale=1.0):
            return (jnp.pad(v.astype(jnp.float32), (0, Cop - Cout)) * scale).reshape(1, Cop)

        inputs += [W1f, _vec(params["g1"]), W2f, _vec(params["b2"]),
                   _vec(params["g2"], drop_scale), _vec(params["rb2"], drop_scale)]
        in_specs += [
            # Constant-index weight/scale blocks are fetched once and reused.
            pl.BlockSpec((3 * Cip, Cop), lambda i: (0, 0)),
            pl.BlockSpec((1, Cop), lambda i: (0, 0)),
            pl.BlockSpec((5 * Cop, Cop), lambda i: (0, 0)),
            pl.BlockSpec((1, Cop), lambda i: (0, 0)),
            pl.BlockSpec((1, Cop), lambda i: (0, 0)),
            pl.BlockSpec((1, Cop), lambda i: (0, 0)),
        ]
        if apply_dropout:
            bits = jax.lax.bitcast_convert_type(
                jax.random.bits(key, (B, L, Cop), jnp.uint32), jnp.int32)
            inputs.append(bits)
            in_specs.append(pl.BlockSpec((Bt, L, Cop), lambda i: (i, 0, 0)))
        cin_p = Cop

    Cop_last = cin_p
    cout_last = couts[-1]
    p_thresh = max(-2 ** 31, min(2 ** 31 - 1, int(round(p_drop * 2.0 ** 32)) - 2 ** 31))

    kernel = functools.partial(
        _cnn_decoder_kernel, n_blocks=n_blocks, couts=tuple(couts),
        eps=float(eps), apply_dropout=apply_dropout, p_thresh=p_thresh)

    out = pl.pallas_call(
        kernel,
        out_shape=jax.ShapeDtypeStruct((B, L, Cop_last), jnp.bfloat16),
        grid=grid,
        in_specs=in_specs,
        out_specs=pl.BlockSpec((Bt, L, Cop_last), lambda i: (i, 0, 0)),
        compiler_params=pltpu.CompilerParams(
            # Batch tiles are independent -> shard across v7x's 2 TensorCores.
            dimension_semantics=("parallel",)),
    )(*inputs)

    return out[:, :, :cout_last].astype(x.dtype)


# ----------------------------------------------------------------------------
# Deterministic parameter init (mirrors module __init__ shapes, torch layouts)
# ----------------------------------------------------------------------------
def init_params(channels, key):
    block_params = []
    for i in range(len(channels) - 1):
        cin, cout = channels[i], channels[i + 1]
        key, k1, k2, k3 = jax.random.split(key, 4)
        block_params.append(dict(
            w1=0.1 * jax.random.normal(k1, (cin, cout, 3), jnp.float32),
            g1=jnp.ones((cout,), jnp.float32),
            w2=0.1 * jax.random.normal(k2, (cout, cout, 5), jnp.float32),
            b2=0.05 * jax.random.normal(k3, (cout,), jnp.float32),
            g2=jnp.ones((cout,), jnp.float32),
            rb2=jnp.zeros((cout,), jnp.float32),
        ))
    return block_params


# ----------------------------------------------------------------------------
# Pure-JAX reference (dropout disabled), same bf16 matmul / f32 accum policy
# ----------------------------------------------------------------------------
def _ref_block(x, p):
    B, L, Cin = x.shape
    W1, W2 = p["w1"], p["w2"]
    Cout = W1.shape[1]
    dn = (((2,), (0,)), ((), ()))
    xb = x.astype(jnp.bfloat16)
    xpad = jnp.pad(xb, ((0, 0), (1, 1), (0, 0)))
    y1 = jnp.zeros((B, L, Cout), jnp.float32)
    for k in range(3):
        d = 1 - k
        y1 = y1 + jax.lax.dot_general(xpad[:, 1 + d:1 + d + L, :],
                                      W1[:, :, k].astype(jnp.bfloat16), dn,
                                      preferred_element_type=jnp.float32)
    y1 = y1 * jax.lax.rsqrt(jnp.mean(y1 * y1, -1, keepdims=True) + RMS_EPS) * p["g1"]
    h = (y1 * jax.nn.sigmoid(y1)).astype(jnp.bfloat16)
    hpad = jnp.pad(h, ((0, 0), (2, 2), (0, 0)))
    y2 = jnp.zeros((B, L, Cout), jnp.float32) + p["b2"]
    for k in range(5):
        d = 2 - k
        y2 = y2 + jax.lax.dot_general(hpad[:, 2 + d:2 + d + L, :],
                                      W2[:, :, k].astype(jnp.bfloat16), dn,
                                      preferred_element_type=jnp.float32)
    z = y2 * jax.lax.rsqrt(jnp.mean(y2 * y2, -1, keepdims=True) + RMS_EPS) * p["g2"] + p["rb2"]
    return z.astype(jnp.bfloat16)     # the kernel chains blocks in bf16


def ref_decoder(x, block_params):
    h = x
    for p in block_params:
        h = _ref_block(h, p)
    return h.astype(x.dtype)


if __name__ == "__main__":
    key = jax.random.PRNGKey(0)
    channels = [8, 32, 16]              # -> 2 ConvBlockDecoder blocks
    B, L = 2, 16

    key, kx, kp, kd = jax.random.split(key, 4)
    x = jax.random.normal(kx, (B, L, channels[0]), jnp.float32)   # (B, seq, C)
    block_params = init_params(channels, kp)

    # Deterministic correctness check (dropout disabled)
    run_nodrop = jax.jit(lambda xx, pp: cnn_decoder(xx, pp, apply_dropout=False))
    out_nodrop = jax.block_until_ready(run_nodrop(x, block_params))
    ref = jax.block_until_ready(ref_decoder(x, block_params))
    assert out_nodrop.shape == (B, L, channels[-1])
    assert jnp.allclose(out_nodrop, ref, rtol=2e-2, atol=2e-2), \
        float(jnp.max(jnp.abs(out_nodrop - ref)))

    # Faithful forward (F.dropout default training=True): dropout applied in-kernel
    run_drop = jax.jit(lambda xx, pp, kk: cnn_decoder(xx, pp, apply_dropout=True,
                                                      rng_key=kk))
    out = jax.block_until_ready(run_drop(x, block_params, kd))
    assert out.shape == (B, L, channels[-1])
    assert bool(jnp.all(jnp.isfinite(out)))

    print("KERNEL_OK")
</pallas_src>

<mosaic_0001>
module attributes {stable_mosaic.version = 11 : i64} {
  func.func @_cnn_decoder_kernel(%arg0: i32, %arg1: memref<2x16x128xbf16, #tpu.memory_space<vmem>>, %arg2: memref<384x128xbf16, #tpu.memory_space<vmem>>, %arg3: memref<1x128xf32, #tpu.memory_space<vmem>>, %arg4: memref<640x128xbf16, #tpu.memory_space<vmem>>, %arg5: memref<1x128xf32, #tpu.memory_space<vmem>>, %arg6: memref<1x128xf32, #tpu.memory_space<vmem>>, %arg7: memref<1x128xf32, #tpu.memory_space<vmem>>, %arg8: memref<384x128xbf16, #tpu.memory_space<vmem>>, %arg9: memref<1x128xf32, #tpu.memory_space<vmem>>, %arg10: memref<640x128xbf16, #tpu.memory_space<vmem>>, %arg11: memref<1x128xf32, #tpu.memory_space<vmem>>, %arg12: memref<1x128xf32, #tpu.memory_space<vmem>>, %arg13: memref<1x128xf32, #tpu.memory_space<vmem>>, %arg14: memref<2x16x128xbf16, #tpu.memory_space<vmem>>) attributes {dimension_semantics = [#tpu.dimension_semantics<parallel>], iteration_bounds = array<i64: 1>, scalar_prefetch = 0 : i64, scratch_operands = 0 : i64, tpu.core_type = #tpu.core_type<tc>, window_params = [{transform_indices = @transform_0, window_bounds = array<i64: 2, 16, 128>}, {pipeline_mode = #tpu.pipeline_mode<synchronous>, transform_indices = @transform_1, window_bounds = array<i64: 384, 128>}, {pipeline_mode = #tpu.pipeline_mode<synchronous>, transform_indices = @transform_2, window_bounds = array<i64: 1, 128>}, {pipeline_mode = #tpu.pipeline_mode<synchronous>, transform_indices = @transform_3, window_bounds = array<i64: 640, 128>}, {pipeline_mode = #tpu.pipeline_mode<synchronous>, transform_indices = @transform_4, window_bounds = array<i64: 1, 128>}, {pipeline_mode = #tpu.pipeline_mode<synchronous>, transform_indices = @transform_5, window_bounds = array<i64: 1, 128>}, {pipeline_mode = #tpu.pipeline_mode<synchronous>, transform_indices = @transform_6, window_bounds = array<i64: 1, 128>}, {pipeline_mode = #tpu.pipeline_mode<synchronous>, transform_indices = @transform_7, window_bounds = array<i64: 384, 128>}, {pipeline_mode = #tpu.pipeline_mode<synchronous>, transform_indices = @transform_8, window_bounds = array<i64: 1, 128>}, {pipeline_mode = #tpu.pipeline_mode<synchronous>, transform_indices = @transform_9, window_bounds = array<i64: 640, 128>}, {pipeline_mode = #tpu.pipeline_mode<synchronous>, transform_indices = @transform_10, window_bounds = array<i64: 1, 128>}, {pipeline_mode = #tpu.pipeline_mode<synchronous>, transform_indices = @transform_11, window_bounds = array<i64: 1, 128>}, {pipeline_mode = #tpu.pipeline_mode<synchronous>, transform_indices = @transform_12, window_bounds = array<i64: 1, 128>}, {transform_indices = @transform_13, window_bounds = array<i64: 2, 16, 128>}]} {
    %0 = tpu.iota {dimensions = array<i32: 1>} : vector<2x16x1xi32>
    %c0 = arith.constant 0 : index
    %c0_0 = arith.constant 0 : index
    %c0_1 = arith.constant 0 : index
    %1 = vector.load %arg1[%c0, %c0_0, %c0_1] : memref<2x16x128xbf16, #tpu.memory_space<vmem>>, vector<2x16x128xbf16>
    %2 = vector.extract_strided_slice %1 {offsets = [0, 15, 0], sizes = [2, 1, 128], strides = [1, 1, 1]} : vector<2x16x128xbf16> to vector<2x1x128xbf16>
    %3 = vector.extract_strided_slice %1 {offsets = [0, 0, 0], sizes = [2, 15, 128], strides = [1, 1, 1]} : vector<2x16x128xbf16> to vector<2x15x128xbf16>
    %4 = tpu.concatenate %2, %3 in 1 : vector<2x1x128xbf16>, vector<2x15x128xbf16> -> vector<2x16x128xbf16>
    %c-1_i32 = arith.constant -1 : i32
    %5 = vector.broadcast %c-1_i32 : i32 to vector<2x16x1xi32>
    %6 = arith.addi %0, %5 : vector<2x16x1xi32>
    %c0_i32 = arith.constant 0 : i32
    %7 = vector.broadcast %c0_i32 : i32 to vector<2x16x1xi32>
    %8 = arith.cmpi sge, %6, %7 : vector<2x16x1xi32>
    %c-1_i32_2 = arith.constant -1 : i32
    %9 = vector.broadcast %c-1_i32_2 : i32 to vector<2x16x1xi32>
    %10 = arith.addi %0, %9 : vector<2x16x1xi32>
    %c16_i32 = arith.constant 16 : i32
    %11 = vector.broadcast %c16_i32 : i32 to vector<2x16x1xi32>
    %12 = arith.cmpi slt, %10, %11 : vector<2x16x1xi32>
    %13 = arith.andi %8, %12 : vector<2x16x1xi1>
    %cst = arith.constant 0.000000e+00 : bf16
    %14 = vector.broadcast %cst : bf16 to vector<2x16x128xbf16>
    %15 = vector.shape_cast %13 : vector<2x16x1xi1> to vector<2x16x1xi1>
    %16 = vector.broadcast %15 : vector<2x16x1xi1> to vector<2x16x128xi1>
    %17 = arith.select %16, %4, %14 : vector<2x16x128xi1>, vector<2x16x128xbf16>
    %18 = vector.extract_strided_slice %1 {offsets = [0, 1, 0], sizes = [2, 15, 128], strides = [1, 1, 1]} : vector<2x16x128xbf16> to vector<2x15x128xbf16>
    %19 = vector.extract_strided_slice %1 {offsets = [0, 0, 0], sizes = [2, 1, 128], strides = [1, 1, 1]} : vector<2x16x128xbf16> to vector<2x1x128xbf16>
    %20 = tpu.concatenate %18, %19 in 1 : vector<2x15x128xbf16>, vector<2x1x128xbf16> -> vector<2x16x128xbf16>
    %c1_i32 = arith.constant 1 : i32
    %21 = vector.broadcast %c1_i32 : i32 to vector<2x16x1xi32>
    %22 = arith.addi %0, %21 : vector<2x16x1xi32>
    %c0_i32_3 = arith.constant 0 : i32
    %23 = vector.broadcast %c0_i32_3 : i32 to vector<2x16x1xi32>
    %24 = arith.cmpi sge, %22, %23 : vector<2x16x1xi32>
    %c1_i32_4 = arith.constant 1 : i32
    %25 = vector.broadcast %c1_i32_4 : i32 to vector<2x16x1xi32>
    %26 = arith.addi %0, %25 : vector<2x16x1xi32>
    %c16_i32_5 = arith.constant 16 : i32
    %27 = vector.broadcast %c16_i32_5 : i32 to vector<2x16x1xi32>
    %28 = arith.cmpi slt, %26, %27 : vector<2x16x1xi32>
    %29 = arith.andi %24, %28 : vector<2x16x1xi1>
    %cst_6 = arith.constant 0.000000e+00 : bf16
    %30 = vector.broadcast %cst_6 : bf16 to vector<2x16x128xbf16>
    %31 = vector.shape_cast %29 : vector<2x16x1xi1> to vector<2x16x1xi1>
    %32 = vector.broadcast %31 : vector<2x16x1xi1> to vector<2x16x128xi1>
    %33 = arith.select %32, %20, %30 : vector<2x16x128xi1>, vector<2x16x128xbf16>
    %34 = tpu.concatenate %17, %1, %33 in 2 : vector<2x16x128xbf16>, vector<2x16x128xbf16>, vector<2x16x128xbf16> -> vector<2x16x384xbf16>
    %35 = vector.shape_cast %34 : vector<2x16x384xbf16> to vector<32x384xbf16>
    %c0_7 = arith.constant 0 : index
    %c0_8 = arith.constant 0 : index
    %36 = vector.load %arg2[%c0_7, %c0_8] : memref<384x128xbf16, #tpu.memory_space<vmem>>, vector<384x128xbf16>
    %cst_9 = arith.constant dense<0.000000e+00> : vector<32x128xf32>
    %37 = tpu.matmul %35, %36, %cst_9 {dimension_numbers = #tpu.dot_dimension_numbers<[1], [0], [0], [1], [0, 0, 1, 1], [], []>} : vector<32x384xbf16>, vector<384x128xbf16>, vector<32x128xf32> -> vector<32x128xf32>
    %38 = arith.mulf %37, %37 : vector<32x128xf32>
    %cst_10 = arith.constant dense<0.000000e+00> : vector<32xf32>
    %39 = vector.multi_reduction <add>, %38, %cst_10 [1] : vector<32x128xf32> to vector<32xf32>
    %40 = vector.shape_cast %39 : vector<32xf32> to vector<32x1xf32>
    %cst_11 = arith.constant 3.125000e-02 : f32
    %41 = vector.broadcast %cst_11 : f32 to vector<32x1xf32>
    %42 = arith.mulf %40, %41 : vector<32x1xf32>
    %cst_12 = arith.constant 9.99999997E-7 : f32
    %43 = vector.broadcast %cst_12 : f32 to vector<32x1xf32>
    %44 = arith.addf %42, %43 : vector<32x1xf32>
    %45 = math.rsqrt %44 : vector<32x1xf32>
    %46 = vector.broadcast %45 : vector<32x1xf32> to vector<32x128xf32>
    %47 = arith.mulf %37, %46 : vector<32x128xf32>
    %c0_13 = arith.constant 0 : index
    %c0_14 = arith.constant 0 : index
    %48 = vector.load %arg3[%c0_13, %c0_14] : memref<1x128xf32, #tpu.memory_space<vmem>>, vector<1x128xf32>
    %49 = vector.broadcast %48 : vector<1x128xf32> to vector<32x128xf32>
    %50 = arith.mulf %47, %49 : vector<32x128xf32>
    %51 = arith.negf %50 : vector<32x128xf32>
    %52 = math.exp %51 : vector<32x128xf32>
    %cst_15 = arith.constant 1.000000e+00 : f32
    %53 = vector.broadcast %cst_15 : f32 to vector<32x128xf32>
    %54 = arith.addf %53, %52 : vector<32x128xf32>
    %55 = arith.divf %53, %54 : vector<32x128xf32>
    %56 = arith.mulf %50, %55 : vector<32x128xf32>
    %57 = arith.truncf %56 : vector<32x128xf32> to vector<32x128xbf16>
    %58 = vector.shape_cast %57 : vector<32x128xbf16> to vector<2x16x128xbf16>
    %59 = vector.extract_strided_slice %58 {offsets = [0, 14, 0], sizes = [2, 2, 128], strides = [1, 1, 1]} : vector<2x16x128xbf16> to vector<2x2x128xbf16>
    %60 = vector.extract_strided_slice %58 {offsets = [0, 0, 0], sizes = [2, 14, 128], strides = [1, 1, 1]} : vector<2x16x128xbf16> to vector<2x14x128xbf16>
    %61 = tpu.concatenate %59, %60 in 1 : vector<2x2x128xbf16>, vector<2x14x128xbf16> -> vector<2x16x128xbf16>
    %c-2_i32 = arith.constant -2 : i32
    %62 = vector.broadcast %c-2_i32 : i32 to vector<2x16x1xi32>
    %63 = arith.addi %0, %62 : vector<2x16x1xi32>
    %c0_i32_16 = arith.constant 0 : i32
    %64 = vector.broadcast %c0_i32_16 : i32 to vector<2x16x1xi32>
    %65 = arith.cmpi sge, %63, %64 : vector<2x16x1xi32>
    %c-2_i32_17 = arith.constant -2 : i32
    %66 = vector.broadcast %c-2_i32_17 : i32 to vector<2x16x1xi32>
    %67 = arith.addi %0, %66 : vector<2x16x1xi32>
    %c16_i32_18 = arith.constant 16 : i32
    %68 = vector.broadcast %c16_i32_18 : i32 to vector<2x16x1xi32>
    %69 = arith.cmpi slt, %67, %68 : vector<2x16x1xi32>
    %70 = arith.andi %65, %69 : vector<2x16x1xi1>
    %cst_19 = arith.constant 0.000000e+00 : bf16
    %71 = vector.broadcast %cst_19 : bf16 to vector<2x16x128xbf16>
    %72 = vector.shape_cast %70 : vector<2x16x1xi1> to vector<2x16x1xi1>
    %73 = vector.broadcast %72 : vector<2x16x1xi1> to vector<2x16x128xi1>
    %74 = arith.select %73, %61, %71 : vector<2x16x128xi1>, vector<2x16x128xbf16>
    %75 = vector.extract_strided_slice %58 {offsets = [0, 15, 0], sizes = [2, 1, 128], strides = [1, 1, 1]} : vector<2x16x128xbf16> to vector<2x1x128xbf16>
    %76 = vector.extract_strided_slice %58 {offsets = [0, 0, 0], sizes = [2, 15, 128], strides = [1, 1, 1]} : vector<2x16x128xbf16> to vector<2x15x128xbf16>
    %77 = tpu.concatenate %75, %76 in 1 : vector<2x1x128xbf16>, vector<2x15x128xbf16> -> vector<2x16x128xbf16>
    %c-1_i32_20 = arith.constant -1 : i32
    %78 = vector.broadcast %c-1_i32_20 : i32 to vector<2x16x1xi32>
    %79 = arith.addi %0, %78 : vector<2x16x1xi32>
    %c0_i32_21 = arith.constant 0 : i32
    %80 = vector.broadcast %c0_i32_21 : i32 to vector<2x16x1xi32>
    %81 = arith.cmpi sge, %79, %80 : vector<2x16x1xi32>
    %c-1_i32_22 = arith.constant -1 : i32
    %82 = vector.broadcast %c-1_i32_22 : i32 to vector<2x16x1xi32>
    %83 = arith.addi %0, %82 : vector<2x16x1xi32>
    %c16_i32_23 = arith.constant 16 : i32
    %84 = vector.broadcast %c16_i32_23 : i32 to vector<2x16x1xi32>
    %85 = arith.cmpi slt, %83, %84 : vector<2x16x1xi32>
    %86 = arith.andi %81, %85 : vector<2x16x1xi1>
    %cst_24 = arith.constant 0.000000e+00 : bf16
    %87 = vector.broadcast %cst_24 : bf16 to vector<2x16x128xbf16>
    %88 = vector.shape_cast %86 : vector<2x16x1xi1> to vector<2x16x1xi1>
    %89 = vector.broadcast %88 : vector<2x16x1xi1> to vector<2x16x128xi1>
    %90 = arith.select %89, %77, %87 : vector<2x16x128xi1>, vector<2x16x128xbf16>
    %91 = vector.extract_strided_slice %58 {offsets = [0, 1, 0], sizes = [2, 15, 128], strides = [1, 1, 1]} : vector<2x16x128xbf16> to vector<2x15x128xbf16>
    %92 = vector.extract_strided_slice %58 {offsets = [0, 0, 0], sizes = [2, 1, 128], strides = [1, 1, 1]} : vector<2x16x128xbf16> to vector<2x1x128xbf16>
    %93 = tpu.concatenate %91, %92 in 1 : vector<2x15x128xbf16>, vector<2x1x128xbf16> -> vector<2x16x128xbf16>
    %c1_i32_25 = arith.constant 1 : i32
    %94 = vector.broadcast %c1_i32_25 : i32 to vector<2x16x1xi32>
    %95 = arith.addi %0, %94 : vector<2x16x1xi32>
    %c0_i32_26 = arith.constant 0 : i32
    %96 = vector.broadcast %c0_i32_26 : i32 to vector<2x16x1xi32>
    %97 = arith.cmpi sge, %95, %96 : vector<2x16x1xi32>
    %c1_i32_27 = arith.constant 1 : i32
    %98 = vector.broadcast %c1_i32_27 : i32 to vector<2x16x1xi32>
    %99 = arith.addi %0, %98 : vector<2x16x1xi32>
    %c16_i32_28 = arith.constant 16 : i32
    %100 = vector.broadcast %c16_i32_28 : i32 to vector<2x16x1xi32>
    %101 = arith.cmpi slt, %99, %100 : vector<2x16x1xi32>
    %102 = arith.andi %97, %101 : vector<2x16x1xi1>
    %cst_29 = arith.constant 0.000000e+00 : bf16
    %103 = vector.broadcast %cst_29 : bf16 to vector<2x16x128xbf16>
    %104 = vector.shape_cast %102 : vector<2x16x1xi1> to vector<2x16x1xi1>
    %105 = vector.broadcast %104 : vector<2x16x1xi1> to vector<2x16x128xi1>
    %106 = arith.select %105, %93, %103 : vector<2x16x128xi1>, vector<2x16x128xbf16>
    %107 = vector.extract_strided_slice %58 {offsets = [0, 2, 0], sizes = [2, 14, 128], strides = [1, 1, 1]} : vector<2x16x128xbf16> to vector<2x14x128xbf16>
    %108 = vector.extract_strided_slice %58 {offsets = [0, 0, 0], sizes = [2, 2, 128], strides = [1, 1, 1]} : vector<2x16x128xbf16> to vector<2x2x128xbf16>
    %109 = tpu.concatenate %107, %108 in 1 : vector<2x14x128xbf16>, vector<2x2x128xbf16> -> vector<2x16x128xbf16>
    %c2_i32 = arith.constant 2 : i32
    %110 = vector.broadcast %c2_i32 : i32 to vector<2x16x1xi32>
    %111 = arith.addi %0, %110 : vector<2x16x1xi32>
    %c0_i32_30 = arith.constant 0 : i32
    %112 = vector.broadcast %c0_i32_30 : i32 to vector<2x16x1xi32>
    %113 = arith.cmpi sge, %111, %112 : vector<2x16x1xi32>
    %c2_i32_31 = arith.constant 2 : i32
    %114 = vector.broadcast %c2_i32_31 : i32 to vector<2x16x1xi32>
    %115 = arith.addi %0, %114 : vector<2x16x1xi32>
    %c16_i32_32 = arith.constant 16 : i32
    %116 = vector.broadcast %c16_i32_32 : i32 to vector<2x16x1xi32>
    %117 = arith.cmpi slt, %115, %116 : vector<2x16x1xi32>
    %118 = arith.andi %113, %117 : vector<2x16x1xi1>
    %cst_33 = arith.constant 0.000000e+00 : bf16
    %119 = vector.broadcast %cst_33 : bf16 to vector<2x16x128xbf16>
    %120 = vector.shape_cast %118 : vector<2x16x1xi1> to vector<2x16x1xi1>
    %121 = vector.broadcast %120 : vector<2x16x1xi1> to vector<2x16x128xi1>
    %122 = arith.select %121, %109, %119 : vector<2x16x128xi1>, vector<2x16x128xbf16>
    %123 = tpu.concatenate %74, %90, %58, %106, %122 in 2 : vector<2x16x128xbf16>, vector<2x16x128xbf16>, vector<2x16x128xbf16>, vector<2x16x128xbf16>, vector<2x16x128xbf16> -> vector<2x16x640xbf16>
    %124 = vector.shape_cast %123 : vector<2x16x640xbf16> to vector<32x640xbf16>
    %c0_34 = arith.constant 0 : index
    %c0_35 = arith.constant 0 : index
    %125 = vector.load %arg4[%c0_34, %c0_35] : memref<640x128xbf16, #tpu.memory_space<vmem>>, vector<640x128xbf16>
    %cst_36 = arith.constant dense<0.000000e+00> : vector<32x128xf32>
    %126 = tpu.matmul %124, %125, %cst_36 {dimension_numbers = #tpu.dot_dimension_numbers<[1], [0], [0], [1], [0, 0, 1, 1], [], []>} : vector<32x640xbf16>, vector<640x128xbf16>, vector<32x128xf32> -> vector<32x128xf32>
    %c0_37 = arith.constant 0 : index
    %c0_38 = arith.constant 0 : index
    %127 = vector.load %arg5[%c0_37, %c0_38] : memref<1x128xf32, #tpu.memory_space<vmem>>, vector<1x128xf32>
    %128 = vector.broadcast %127 : vector<1x128xf32> to vector<32x128xf32>
    %129 = arith.addf %126, %128 : vector<32x128xf32>
    %130 = arith.mulf %129, %129 : vector<32x128xf32>
    %cst_39 = arith.constant dense<0.000000e+00> : vector<32xf32>
    %131 = vector.multi_reduction <add>, %130, %cst_39 [1] : vector<32x128xf32> to vector<32xf32>
    %132 = vector.shape_cast %131 : vector<32xf32> to vector<32x1xf32>
    %cst_40 = arith.constant 3.125000e-02 : f32
    %133 = vector.broadcast %cst_40 : f32 to vector<32x1xf32>
    %134 = arith.mulf %132, %133 : vector<32x1xf32>
    %cst_41 = arith.constant 9.99999997E-7 : f32
    %135 = vector.broadcast %cst_41 : f32 to vector<32x1xf32>
    %136 = arith.addf %134, %135 : vector<32x1xf32>
    %137 = math.rsqrt %136 : vector<32x1xf32>
    %138 = vector.broadcast %137 : vector<32x1xf32> to vector<32x128xf32>
    %139 = arith.mulf %129, %138 : vector<32x128xf32>
    %c0_42 = arith.constant 0 : index
    %c0_43 = arith.constant 0 : index
    %140 = vector.load %arg6[%c0_42, %c0_43] : memref<1x128xf32, #tpu.memory_space<vmem>>, vector<1x128xf32>
    %141 = vector.broadcast %140 : vector<1x128xf32> to vector<32x128xf32>
    %142 = arith.mulf %139, %141 : vector<32x128xf32>
    %c0_44 = arith.constant 0 : index
    %c0_45 = arith.constant 0 : index
    %143 = vector.load %arg7[%c0_44, %c0_45] : memref<1x128xf32, #tpu.memory_space<vmem>>, vector<1x128xf32>
    %144 = vector.broadcast %143 : vector<1x128xf32> to vector<32x128xf32>
    %145 = arith.addf %142, %144 : vector<32x128xf32>
    %146 = arith.truncf %145 : vector<32x128xf32> to vector<32x128xbf16>
    %147 = vector.shape_cast %146 : vector<32x128xbf16> to vector<2x16x128xbf16>
    %148 = vector.extract_strided_slice %147 {offsets = [0, 15, 0], sizes = [2, 1, 128], strides = [1, 1, 1]} : vector<2x16x128xbf16> to vector<2x1x128xbf16>
    %149 = vector.extract_strided_slice %147 {offsets = [0, 0, 0], sizes = [2, 15, 128], strides = [1, 1, 1]} : vector<2x16x128xbf16> to vector<2x15x128xbf16>
    %150 = tpu.concatenate %148, %149 in 1 : vector<2x1x128xbf16>, vector<2x15x128xbf16> -> vector<2x16x128xbf16>
    %c-1_i32_46 = arith.constant -1 : i32
    %151 = vector.broadcast %c-1_i32_46 : i32 to vector<2x16x1xi32>
    %152 = arith.addi %0, %151 : vector<2x16x1xi32>
    %c0_i32_47 = arith.constant 0 : i32
    %153 = vector.broadcast %c0_i32_47 : i32 to vector<2x16x1xi32>
    %154 = arith.cmpi sge, %152, %153 : vector<2x16x1xi32>
    %c-1_i32_48 = arith.constant -1 : i32
    %155 = vector.broadcast %c-1_i32_48 : i32 to vector<2x16x1xi32>
    %156 = arith.addi %0, %155 : vector<2x16x1xi32>
    %c16_i32_49 = arith.constant 16 : i32
    %157 = vector.broadcast %c16_i32_49 : i32 to vector<2x16x1xi32>
    %158 = arith.cmpi slt, %156, %157 : vector<2x16x1xi32>
    %159 = arith.andi %154, %158 : vector<2x16x1xi1>
    %cst_50 = arith.constant 0.000000e+00 : bf16
    %160 = vector.broadcast %cst_50 : bf16 to vector<2x16x128xbf16>
    %161 = vector.shape_cast %159 : vector<2x16x1xi1> to vector<2x16x1xi1>
    %162 = vector.broadcast %161 : vector<2x16x1xi1> to vector<2x16x128xi1>
    %163 = arith.select %162, %150, %160 : vector<2x16x128xi1>, vector<2x16x128xbf16>
    %164 = vector.extract_strided_slice %147 {offsets = [0, 1, 0], sizes = [2, 15, 128], strides = [1, 1, 1]} : vector<2x16x128xbf16> to vector<2x15x128xbf16>
    %165 = vector.extract_strided_slice %147 {offsets = [0, 0, 0], sizes = [2, 1, 128], strides = [1, 1, 1]} : vector<2x16x128xbf16> to vector<2x1x128xbf16>
    %166 = tpu.concatenate %164, %165 in 1 : vector<2x15x128xbf16>, vector<2x1x128xbf16> -> vector<2x16x128xbf16>
    %c1_i32_51 = arith.constant 1 : i32
    %167 = vector.broadcast %c1_i32_51 : i32 to vector<2x16x1xi32>
    %168 = arith.addi %0, %167 : vector<2x16x1xi32>
    %c0_i32_52 = arith.constant 0 : i32
    %169 = vector.broadcast %c0_i32_52 : i32 to vector<2x16x1xi32>
    %170 = arith.cmpi sge, %168, %169 : vector<2x16x1xi32>
    %c1_i32_53 = arith.constant 1 : i32
    %171 = vector.broadcast %c1_i32_53 : i32 to vector<2x16x1xi32>
    %172 = arith.addi %0, %171 : vector<2x16x1xi32>
    %c16_i32_54 = arith.constant 16 : i32
    %173 = vector.broadcast %c16_i32_54 : i32 to vector<2x16x1xi32>
    %174 = arith.cmpi slt, %172, %173 : vector<2x16x1xi32>
    %175 = arith.andi %170, %174 : vector<2x16x1xi1>
    %cst_55 = arith.constant 0.000000e+00 : bf16
    %176 = vector.broadcast %cst_55 : bf16 to vector<2x16x128xbf16>
    %177 = vector.shape_cast %175 : vector<2x16x1xi1> to vector<2x16x1xi1>
    %178 = vector.broadcast %177 : vector<2x16x1xi1> to vector<2x16x128xi1>
    %179 = arith.select %178, %166, %176 : vector<2x16x128xi1>, vector<2x16x128xbf16>
    %180 = tpu.concatenate %163, %147, %179 in 2 : vector<2x16x128xbf16>, vector<2x16x128xbf16>, vector<2x16x128xbf16> -> vector<2x16x384xbf16>
    %181 = vector.shape_cast %180 : vector<2x16x384xbf16> to vector<32x384xbf16>
    %c0_56 = arith.constant 0 : index
    %c0_57 = arith.constant 0 : index
    %182 = vector.load %arg8[%c0_56, %c0_57] : memref<384x128xbf16, #tpu.memory_space<vmem>>, vector<384x128xbf16>
    %cst_58 = arith.constant dense<0.000000e+00> : vector<32x128xf32>
    %183 = tpu.matmul %181, %182, %cst_58 {dimension_numbers = #tpu.dot_dimension_numbers<[1], [0], [0], [1], [0, 0, 1, 1], [], []>} : vector<32x384xbf16>, vector<384x128xbf16>, vector<32x128xf32> -> vector<32x128xf32>
    %184 = arith.mulf %183, %183 : vector<32x128xf32>
    %cst_59 = arith.constant dense<0.000000e+00> : vector<32xf32>
    %185 = vector.multi_reduction <add>, %184, %cst_59 [1] : vector<32x128xf32> to vector<32xf32>
    %186 = vector.shape_cast %185 : vector<32xf32> to vector<32x1xf32>
    %cst_60 = arith.constant 6.250000e-02 : f32
    %187 = vector.broadcast %cst_60 : f32 to vector<32x1xf32>
    %188 = arith.mulf %186, %187 : vector<32x1xf32>
    %cst_61 = arith.constant 9.99999997E-7 : f32
    %189 = vector.broadcast %cst_61 : f32 to vector<32x1xf32>
    %190 = arith.addf %188, %189 : vector<32x1xf32>
    %191 = math.rsqrt %190 : vector<32x1xf32>
    %192 = vector.broadcast %191 : vector<32x1xf32> to vector<32x128xf32>
    %193 = arith.mulf %183, %192 : vector<32x128xf32>
    %c0_62 = arith.constant 0 : index
    %c0_63 = arith.constant 0 : index
    %194 = vector.load %arg9[%c0_62, %c0_63] : memref<1x128xf32, #tpu.memory_space<vmem>>, vector<1x128xf32>
    %195 = vector.broadcast %194 : vector<1x128xf32> to vector<32x128xf32>
    %196 = arith.mulf %193, %195 : vector<32x128xf32>
    %197 = arith.negf %196 : vector<32x128xf32>
    %198 = math.exp %197 : vector<32x128xf32>
    %cst_64 = arith.constant 1.000000e+00 : f32
    %199 = vector.broadcast %cst_64 : f32 to vector<32x128xf32>
    %200 = arith.addf %199, %198 : vector<32x128xf32>
    %201 = arith.divf %199, %200 : vector<32x128xf32>
    %202 = arith.mulf %196, %201 : vector<32x128xf32>
    %203 = arith.truncf %202 : vector<32x128xf32> to vector<32x128xbf16>
    %204 = vector.shape_cast %203 : vector<32x128xbf16> to vector<2x16x128xbf16>
    %205 = vector.extract_strided_slice %204 {offsets = [0, 14, 0], sizes = [2, 2, 128], strides = [1, 1, 1]} : vector<2x16x128xbf16> to vector<2x2x128xbf16>
    %206 = vector.extract_strided_slice %204 {offsets = [0, 0, 0], sizes = [2, 14, 128], strides = [1, 1, 1]} : vector<2x16x128xbf16> to vector<2x14x128xbf16>
    %207 = tpu.concatenate %205, %206 in 1 : vector<2x2x128xbf16>, vector<2x14x128xbf16> -> vector<2x16x128xbf16>
    %c-2_i32_65 = arith.constant -2 : i32
    %208 = vector.broadcast %c-2_i32_65 : i32 to vector<2x16x1xi32>
    %209 = arith.addi %0, %208 : vector<2x16x1xi32>
    %c0_i32_66 = arith.constant 0 : i32
    %210 = vector.broadcast %c0_i32_66 : i32 to vector<2x16x1xi32>
    %211 = arith.cmpi sge, %209, %210 : vector<2x16x1xi32>
    %c-2_i32_67 = arith.constant -2 : i32
    %212 = vector.broadcast %c-2_i32_67 : i32 to vector<2x16x1xi32>
    %213 = arith.addi %0, %212 : vector<2x16x1xi32>
    %c16_i32_68 = arith.constant 16 : i32
    %214 = vector.broadcast %c16_i32_68 : i32 to vector<2x16x1xi32>
    %215 = arith.cmpi slt, %213, %214 : vector<2x16x1xi32>
    %216 = arith.andi %211, %215 : vector<2x16x1xi1>
    %cst_69 = arith.constant 0.000000e+00 : bf16
    %217 = vector.broadcast %cst_69 : bf16 to vector<2x16x128xbf16>
    %218 = vector.shape_cast %216 : vector<2x16x1xi1> to vector<2x16x1xi1>
    %219 = vector.broadcast %218 : vector<2x16x1xi1> to vector<2x16x128xi1>
    %220 = arith.select %219, %207, %217 : vector<2x16x128xi1>, vector<2x16x128xbf16>
    %221 = vector.extract_strided_slice %204 {offsets = [0, 15, 0], sizes = [2, 1, 128], strides = [1, 1, 1]} : vector<2x16x128xbf16> to vector<2x1x128xbf16>
    %222 = vector.extract_strided_slice %204 {offsets = [0, 0, 0], sizes = [2, 15, 128], strides = [1, 1, 1]} : vector<2x16x128xbf16> to vector<2x15x128xbf16>
    %223 = tpu.concatenate %221, %222 in 1 : vector<2x1x128xbf16>, vector<2x15x128xbf16> -> vector<2x16x128xbf16>
    %c-1_i32_70 = arith.constant -1 : i32
    %224 = vector.broadcast %c-1_i32_70 : i32 to vector<2x16x1xi32>
    %225 = arith.addi %0, %224 : vector<2x16x1xi32>
    %c0_i32_71 = arith.constant 0 : i32
    %226 = vector.broadcast %c0_i32_71 : i32 to vector<2x16x1xi32>
    %227 = arith.cmpi sge, %225, %226 : vector<2x16x1xi32>
    %c-1_i32_72 = arith.constant -1 : i32
    %228 = vector.broadcast %c-1_i32_72 : i32 to vector<2x16x1xi32>
    %229 = arith.addi %0, %228 : vector<2x16x1xi32>
    %c16_i32_73 = arith.constant 16 : i32
    %230 = vector.broadcast %c16_i32_73 : i32 to vector<2x16x1xi32>
    %231 = arith.cmpi slt, %229, %230 : vector<2x16x1xi32>
    %232 = arith.andi %227, %231 : vector<2x16x1xi1>
    %cst_74 = arith.constant 0.000000e+00 : bf16
    %233 = vector.broadcast %cst_74 : bf16 to vector<2x16x128xbf16>
    %234 = vector.shape_cast %232 : vector<2x16x1xi1> to vector<2x16x1xi1>
    %235 = vector.broadcast %234 : vector<2x16x1xi1> to vector<2x16x128xi1>
    %236 = arith.select %235, %223, %233 : vector<2x16x128xi1>, vector<2x16x128xbf16>
    %237 = vector.extract_strided_slice %204 {offsets = [0, 1, 0], sizes = [2, 15, 128], strides = [1, 1, 1]} : vector<2x16x128xbf16> to vector<2x15x128xbf16>
    %238 = vector.extract_strided_slice %204 {offsets = [0, 0, 0], sizes = [2, 1, 128], strides = [1, 1, 1]} : vector<2x16x128xbf16> to vector<2x1x128xbf16>
    %239 = tpu.concatenate %237, %238 in 1 : vector<2x15x128xbf16>, vector<2x1x128xbf16> -> vector<2x16x128xbf16>
    %c1_i32_75 = arith.constant 1 : i32
    %240 = vector.broadcast %c1_i32_75 : i32 to vector<2x16x1xi32>
    %241 = arith.addi %0, %240 : vector<2x16x1xi32>
    %c0_i32_76 = arith.constant 0 : i32
    %242 = vector.broadcast %c0_i32_76 : i32 to vector<2x16x1xi32>
    %243 = arith.cmpi sge, %241, %242 : vector<2x16x1xi32>
    %c1_i32_77 = arith.constant 1 : i32
    %244 = vector.broadcast %c1_i32_77 : i32 to vector<2x16x1xi32>
    %245 = arith.addi %0, %244 : vector<2x16x1xi32>
    %c16_i32_78 = arith.constant 16 : i32
    %246 = vector.broadcast %c16_i32_78 : i32 to vector<2x16x1xi32>
    %247 = arith.cmpi slt, %245, %246 : vector<2x16x1xi32>
    %248 = arith.andi %243, %247 : vector<2x16x1xi1>
    %cst_79 = arith.constant 0.000000e+00 : bf16
    %249 = vector.broadcast %cst_79 : bf16 to vector<2x16x128xbf16>
    %250 = vector.shape_cast %248 : vector<2x16x1xi1> to vector<2x16x1xi1>
    %251 = vector.broadcast %250 : vector<2x16x1xi1> to vector<2x16x128xi1>
    %252 = arith.select %251, %239, %249 : vector<2x16x128xi1>, vector<2x16x128xbf16>
    %253 = vector.extract_strided_slice %204 {offsets = [0, 2, 0], sizes = [2, 14, 128], strides = [1, 1, 1]} : vector<2x16x128xbf16> to vector<2x14x128xbf16>
    %254 = vector.extract_strided_slice %204 {offsets = [0, 0, 0], sizes = [2, 2, 128], strides = [1, 1, 1]} : vector<2x16x128xbf16> to vector<2x2x128xbf16>
    %255 = tpu.concatenate %253, %254 in 1 : vector<2x14x128xbf16>, vector<2x2x128xbf16> -> vector<2x16x128xbf16>
    %c2_i32_80 = arith.constant 2 : i32
    %256 = vector.broadcast %c2_i32_80 : i32 to vector<2x16x1xi32>
    %257 = arith.addi %0, %256 : vector<2x16x1xi32>
    %c0_i32_81 = arith.constant 0 : i32
    %258 = vector.broadcast %c0_i32_81 : i32 to vector<2x16x1xi32>
    %259 = arith.cmpi sge, %257, %258 : vector<2x16x1xi32>
    %c2_i32_82 = arith.constant 2 : i32
    %260 = vector.broadcast %c2_i32_82 : i32 to vector<2x16x1xi32>
    %261 = arith.addi %0, %260 : vector<2x16x1xi32>
    %c16_i32_83 = arith.constant 16 : i32
    %262 = vector.broadcast %c16_i32_83 : i32 to vector<2x16x1xi32>
    %263 = arith.cmpi slt, %261, %262 : vector<2x16x1xi32>
    %264 = arith.andi %259, %263 : vector<2x16x1xi1>
    %cst_84 = arith.constant 0.000000e+00 : bf16
    %265 = vector.broadcast %cst_84 : bf16 to vector<2x16x128xbf16>
    %266 = vector.shape_cast %264 : vector<2x16x1xi1> to vector<2x16x1xi1>
    %267 = vector.broadcast %266 : vector<2x16x1xi1> to vector<2x16x128xi1>
    %268 = arith.select %267, %255, %265 : vector<2x16x128xi1>, vector<2x16x128xbf16>
    %269 = tpu.concatenate %220, %236, %204, %252, %268 in 2 : vector<2x16x128xbf16>, vector<2x16x128xbf16>, vector<2x16x128xbf16>, vector<2x16x128xbf16>, vector<2x16x128xbf16> -> vector<2x16x640xbf16>
    %270 = vector.shape_cast %269 : vector<2x16x640xbf16> to vector<32x640xbf16>
    %c0_85 = arith.constant 0 : index
    %c0_86 = arith.constant 0 : index
    %271 = vector.load %arg10[%c0_85, %c0_86] : memref<640x128xbf16, #tpu.memory_space<vmem>>, vector<640x128xbf16>
    %cst_87 = arith.constant dense<0.000000e+00> : vector<32x128xf32>
    %272 = tpu.matmul %270, %271, %cst_87 {dimension_numbers = #tpu.dot_dimension_numbers<[1], [0], [0], [1], [0, 0, 1, 1], [], []>} : vector<32x640xbf16>, vector<640x128xbf16>, vector<32x128xf32> -> vector<32x128xf32>
    %c0_88 = arith.constant 0 : index
    %c0_89 = arith.constant 0 : index
    %273 = vector.load %arg11[%c0_88, %c0_89] : memref<1x128xf32, #tpu.memory_space<vmem>>, vector<1x128xf32>
    %274 = vector.broadcast %273 : vector<1x128xf32> to vector<32x128xf32>
    %275 = arith.addf %272, %274 : vector<32x128xf32>
    %276 = arith.mulf %275, %275 : vector<32x128xf32>
    %cst_90 = arith.constant dense<0.000000e+00> : vector<32xf32>
    %277 = vector.multi_reduction <add>, %276, %cst_90 [1] : vector<32x128xf32> to vector<32xf32>
    %278 = vector.shape_cast %277 : vector<32xf32> to vector<32x1xf32>
    %cst_91 = arith.constant 6.250000e-02 : f32
    %279 = vector.broadcast %cst_91 : f32 to vector<32x1xf32>
    %280 = arith.mulf %278, %279 : vector<32x1xf32>
    %cst_92 = arith.constant 9.99999997E-7 : f32
    %281 = vector.broadcast %cst_92 : f32 to vector<32x1xf32>
    %282 = arith.addf %280, %281 : vector<32x1xf32>
    %283 = math.rsqrt %282 : vector<32x1xf32>
    %284 = vector.broadcast %283 : vector<32x1xf32> to vector<32x128xf32>
    %285 = arith.mulf %275, %284 : vector<32x128xf32>
    %c0_93 = arith.constant 0 : index
    %c0_94 = arith.constant 0 : index
    %286 = vector.load %arg12[%c0_93, %c0_94] : memref<1x128xf32, #tpu.memory_space<vmem>>, vector<1x128xf32>
    %287 = vector.broadcast %286 : vector<1x128xf32> to vector<32x128xf32>
    %288 = arith.mulf %285, %287 : vector<32x128xf32>
    %c0_95 = arith.constant 0 : index
    %c0_96 = arith.constant 0 : index
    %289 = vector.load %arg13[%c0_95, %c0_96] : memref<1x128xf32, #tpu.memory_space<vmem>>, vector<1x128xf32>
    %290 = vector.broadcast %289 : vector<1x128xf32> to vector<32x128xf32>
    %291 = arith.addf %288, %290 : vector<32x128xf32>
    %292 = arith.truncf %291 : vector<32x128xf32> to vector<32x128xbf16>
    %293 = vector.shape_cast %292 : vector<32x128xbf16> to vector<2x16x128xbf16>
    %c0_97 = arith.constant 0 : index
    %c0_98 = arith.constant 0 : index
    %c0_99 = arith.constant 0 : index
    %294 = vector.load %arg14[%c0_97, %c0_98, %c0_99] : memref<2x16x128xbf16, #tpu.memory_space<vmem>>, vector<2x16x128xbf16>
    tpu.vector_store %arg14[%c0_97, %c0_98, %c0_99], %293 {strides = array<i32>} : memref<2x16x128xbf16, #tpu.memory_space<vmem>>, vector<2x16x128xbf16>,
    return
  }
  func.func @transform_0(%arg0: i32) -> (i32, i32, i32) {
    %c0_i32 = arith.constant 0 : i32
    %c0_i32_0 = arith.constant 0 : i32
    %c0_i32_1 = arith.constant 0 : i32
    return %arg0, %c0_i32, %c0_i32_0 : i32, i32, i32
  }
  func.func @transform_1(%arg0: i32) -> (i32, i32) {
    %c0_i32 = arith.constant 0 : i32
    %c0_i32_0 = arith.constant 0 : i32
    %c0_i32_1 = arith.constant 0 : i32
    return %c0_i32, %c0_i32_0 : i32, i32
  }
  func.func @transform_2(%arg0: i32) -> (i32, i32) {
    %c0_i32 = arith.constant 0 : i32
    %c0_i32_0 = arith.constant 0 : i32
    %c0_i32_1 = arith.constant 0 : i32
    return %c0_i32, %c0_i32_0 : i32, i32
  }
  func.func @transform_3(%arg0: i32) -> (i32, i32) {
    %c0_i32 = arith.constant 0 : i32
    %c0_i32_0 = arith.constant 0 : i32
    %c0_i32_1 = arith.constant 0 : i32
    return %c0_i32, %c0_i32_0 : i32, i32
  }
  func.func @transform_4(%arg0: i32) -> (i32, i32) {
    %c0_i32 = arith.constant 0 : i32
    %c0_i32_0 = arith.constant 0 : i32
    %c0_i32_1 = arith.constant 0 : i32
    return %c0_i32, %c0_i32_0 : i32, i32
  }
  func.func @transform_5(%arg0: i32) -> (i32, i32) {
    %c0_i32 = arith.constant 0 : i32
    %c0_i32_0 = arith.constant 0 : i32
    %c0_i32_1 = arith.constant 0 : i32
    return %c0_i32, %c0_i32_0 : i32, i32
  }
  func.func @transform_6(%arg0: i32) -> (i32, i32) {
    %c0_i32 = arith.constant 0 : i32
    %c0_i32_0 = arith.constant 0 : i32
    %c0_i32_1 = arith.constant 0 : i32
    return %c0_i32, %c0_i32_0 : i32, i32
  }
  func.func @transform_7(%arg0: i32) -> (i32, i32) {
    %c0_i32 = arith.constant 0 : i32
    %c0_i32_0 = arith.constant 0 : i32
    %c0_i32_1 = arith.constant 0 : i32
    return %c0_i32, %c0_i32_0 : i32, i32
  }
  func.func @transform_8(%arg0: i32) -> (i32, i32) {
    %c0_i32 = arith.constant 0 : i32
    %c0_i32_0 = arith.constant 0 : i32
    %c0_i32_1 = arith.constant 0 : i32
    return %c0_i32, %c0_i32_0 : i32, i32
  }
  func.func @transform_9(%arg0: i32) -> (i32, i32) {
    %c0_i32 = arith.constant 0 : i32
    %c0_i32_0 = arith.constant 0 : i32
    %c0_i32_1 = arith.constant 0 : i32
    return %c0_i32, %c0_i32_0 : i32, i32
  }
  func.func @transform_10(%arg0: i32) -> (i32, i32) {
    %c0_i32 = arith.constant 0 : i32
    %c0_i32_0 = arith.constant 0 : i32
    %c0_i32_1 = arith.constant 0 : i32
    return %c0_i32, %c0_i32_0 : i32, i32
  }
  func.func @transform_11(%arg0: i32) -> (i32, i32) {
    %c0_i32 = arith.constant 0 : i32
    %c0_i32_0 = arith.constant 0 : i32
    %c0_i32_1 = arith.constant 0 : i32
    return %c0_i32, %c0_i32_0 : i32, i32
  }
  func.func @transform_12(%arg0: i32) -> (i32, i32) {
    %c0_i32 = arith.constant 0 : i32
    %c0_i32_0 = arith.constant 0 : i32
    %c0_i32_1 = arith.constant 0 : i32
    return %c0_i32, %c0_i32_0 : i32, i32
  }
  func.func @transform_13(%arg0: i32) -> (i32, i32, i32) {
    %c0_i32 = arith.constant 0 : i32
    %c0_i32_0 = arith.constant 0 : i32
    %c0_i32_1 = arith.constant 0 : i32
    return %arg0, %c0_i32, %c0_i32_0 : i32, i32, i32
  }
}

</mosaic_0001>

<llo_original>
// kernel: _lambda_.1
$region0: #{_lambda_.1}
  #allocation0 [shape = 'u32[]', space=smem, size = 0x4, offset = 0x4, fixed_abs, tag = 'smem constant byte address 0x4 - core index']
  #allocation1 [shape = 'u32[144,128]{1,0:T(1,128)}', space=vmem, size = 0x12000, scoped, tag = 'internal scratch']
  %s0 = inlined_call_operand.vmem [shape: bf16[2,16,128], index: 0, kind: input, shape index: {}]
  %s1 = inlined_call_operand.vmem [shape: bf16[384,128], index: 1, kind: input, shape index: {}]
  %s2 = inlined_call_operand.vmem [shape: f32[1,128], index: 2, kind: input, shape index: {}]
  %s3 = inlined_call_operand.vmem [shape: bf16[640,128], index: 3, kind: input, shape index: {}]
  %s4 = inlined_call_operand.vmem [shape: f32[1,128], index: 4, kind: input, shape index: {}]
  %s5 = inlined_call_operand.vmem [shape: f32[1,128], index: 5, kind: input, shape index: {}]
  %s6 = inlined_call_operand.vmem [shape: f32[1,128], index: 6, kind: input, shape index: {}]
  %s7 = inlined_call_operand.vmem [shape: bf16[384,128], index: 7, kind: input, shape index: {}]
  %s8 = inlined_call_operand.vmem [shape: f32[1,128], index: 8, kind: input, shape index: {}]
  %s9 = inlined_call_operand.vmem [shape: bf16[640,128], index: 9, kind: input, shape index: {}]
  %s10 = inlined_call_operand.vmem [shape: f32[1,128], index: 10, kind: input, shape index: {}]
  %s11 = inlined_call_operand.vmem [shape: f32[1,128], index: 11, kind: input, shape index: {}]
  %s12 = inlined_call_operand.vmem [shape: f32[1,128], index: 12, kind: input, shape index: {}]
  %s13 = inlined_call_operand.vmem [shape: bf16[2,16,128], index: 13, kind: output, shape index: {}]
  %s14 = sld [smem:[#allocation0]]
  $region62: #{_lambda_.1} parent=0
    _
  %s16 = ssub.s32 1, %s14
  %s17 = scalar_select 0, %s16, %s14
  // Predicated region
  $region2: #{_lambda_.1} parent=0 // pred_check
    _
  $region3: #{_lambda_.1} parent=0 // pred_check_branch
    %19 = sbr.rel (0) target = $region5
  $region4: #{_lambda_.1} parent=0 // pred_region
    _
  $region5: #{_lambda_.1} parent=0 // pred_fallthru
    _
  // Predicated region
  $region6: #{_lambda_.1} parent=0 // pred_check
    _
  $region7: #{_lambda_.1} parent=0 // pred_check_branch
    %21 = sbr.rel (0) target = $region9
  $region8: #{_lambda_.1} parent=0 // pred_region
    _
  $region9: #{_lambda_.1} parent=0 // pred_fallthru
    _
  // Predicated region
  $region10: #{_lambda_.1} parent=0 // pred_check
    _
  $region11: #{_lambda_.1} parent=0 // pred_check_branch
    %23 = sbr.rel (0) target = $region13
  $region12: #{_lambda_.1} parent=0 // pred_region
    _
  $region13: #{_lambda_.1} parent=0 // pred_fallthru
    _
  // Predicated region
  $region14: #{_lambda_.1} parent=0 // pred_check
    _
  $region15: #{_lambda_.1} parent=0 // pred_check_branch
    %25 = sbr.rel (0) target = $region17
  $region16: #{_lambda_.1} parent=0 // pred_region
    _
  $region17: #{_lambda_.1} parent=0 // pred_fallthru
    _
  // Predicated region
  $region18: #{_lambda_.1} parent=0 // pred_check
    _
  $region19: #{_lambda_.1} parent=0 // pred_check_branch
    %27 = sbr.rel (0) target = $region21
  $region20: #{_lambda_.1} parent=0 // pred_region
    _
  $region21: #{_lambda_.1} parent=0 // pred_fallthru
    _
  // Predicated region
  $region22: #{_lambda_.1} parent=0 // pred_check
    _
  $region23: #{_lambda_.1} parent=0 // pred_check_branch
    %29 = sbr.rel (0) target = $region25
  $region24: #{_lambda_.1} parent=0 // pred_region
    _
  $region25: #{_lambda_.1} parent=0 // pred_fallthru
    _
  // Predicated region
  $region26: #{_lambda_.1} parent=0 // pred_check
    _
  $region27: #{_lambda_.1} parent=0 // pred_check_branch
    %31 = sbr.rel (0) target = $region29
  $region28: #{_lambda_.1} parent=0 // pred_region
    _
  $region29: #{_lambda_.1} parent=0 // pred_fallthru
    _
  // Predicated region
  $region30: #{_lambda_.1} parent=0 // pred_check
    _
  $region31: #{_lambda_.1} parent=0 // pred_check_branch
    %33 = sbr.rel (0) target = $region33
  $region32: #{_lambda_.1} parent=0 // pred_region
    _
  $region33: #{_lambda_.1} parent=0 // pred_fallthru
    _
  // Predicated region
  $region34: #{_lambda_.1} parent=0 // pred_check
    _
  $region35: #{_lambda_.1} parent=0 // pred_check_branch
    %35 = sbr.rel (0) target = $region37
  $region36: #{_lambda_.1} parent=0 // pred_region
    _
  $region37: #{_lambda_.1} parent=0 // pred_fallthru
    _
  // Predicated region
  $region38: #{_lambda_.1} parent=0 // pred_check
    _
  $region39: #{_lambda_.1} parent=0 // pred_check_branch
    %37 = sbr.rel (0) target = $region41
  $region40: #{_lambda_.1} parent=0 // pred_region
    _
  $region41: #{_lambda_.1} parent=0 // pred_fallthru
    _
  // Predicated region
  $region42: #{_lambda_.1} parent=0 // pred_check
    _
  $region43: #{_lambda_.1} parent=0 // pred_check_branch
    %39 = sbr.rel (0) target = $region45
  $region44: #{_lambda_.1} parent=0 // pred_region
    _
  $region45: #{_lambda_.1} parent=0 // pred_fallthru
    _
  // Predicated region
  $region46: #{_lambda_.1} parent=0 // pred_check
    _
  $region47: #{_lambda_.1} parent=0 // pred_check_branch
    %41 = sbr.rel (0) target = $region49
  $region48: #{_lambda_.1} parent=0 // pred_region
    _
  $region49: #{_lambda_.1} parent=0 // pred_fallthru
    _
  // Predicated region
  $region50: #{_lambda_.1} parent=0 // pred_check
    _
  $region51: #{_lambda_.1} parent=0 // pred_check_branch
    %43 = sbr.rel (0) target = $region53
  $region52: #{_lambda_.1} parent=0 // pred_region
    _
  $region53: #{_lambda_.1} parent=0 // pred_fallthru
    _
  %v47 = vlaneseq
  %v48 = vshrl.u32 %v47, 7
  %v49 = vadd.s32 %v48, 8
  %v50 = vld [vmem:[%s0] sm:$0xf]
  %v51 = vld [vmem:[%s0 + $0x4] sm:$0xf]
  %v52 = vld [vmem:[%s0 + $0x8] sm:$0xf]
  %v53 = vld [vmem:[%s0 + $0xc] sm:$0xf]
  %v56 = vunpack.c.l.b16 %v51
  %v57 = vunpack.c.l.b16 %v53
  %v58 = vpack.c.b16 %v56, %v56
  %v59 = vpack.c.b16 %v57, %v57
  %v61 = vshrl.u32 %v58, 16
  %v63 = vrot.slane %v61, 3
  %v65 = vshrl.u32 %v59, 16
  %v67 = vrot.slane %v65, 3
  %v72 = vunpack.c.l.b16 %v50
  %v73 = vunpack.c.l.b16 %v52
  %v74 = vpack.c.b16 %v56, %v72
  %v75 = vpack.c.b16 %v57, %v73
  %v77 = vshrl.u32 %v74, 16
  %v79 = vrot.slane %v77, 7
  %v80 = vshll.u32 %v74, 16
  %v82 = vor.u32 %v79, %v80
  %v84 = vshrl.u32 %v75, 16
  %v86 = vrot.slane %v84, 7
  %v87 = vshll.u32 %v75, 16
  %v89 = vor.u32 %v86, %v87
  %vm92 = vcmask 1040384
  %vm93 = vsmask.f32 256
  %vm94 = vmand %vm92, %vm93
  %v95 = vsel %vm94, %v63, %v82
  %v96 = vsel %vm94, %v67, %v89
  %v97 = vadd.s32 %v48, 4294967295
  %v98 = vadd.s32 %v49, 4294967295
  %vm99 = vcmp.ge.s32.totalorder %v97, 0
  %vm100 = vcmp.ge.s32.totalorder %v98, 0
  %vm101 = vcmp.lt.s32.totalorder %v97, 16
  %vm102 = vcmp.lt.s32.totalorder %v98, 16
  %vm103 = vmand %vm99, %vm101
  %vm104 = vmand %vm100, %vm102
  %v105 = vsel %vm103, 1, 0
  %v106 = vsel %vm104, 1, 0
  %vm107 = vcmp.eq.s32.totalorder %v105, 1
  %vm108 = vcmp.eq.s32.totalorder %v106, 1
  %vm109 = vmpackc.low %vm107, %vm107
  %vm110 = vmpackc.low %vm108, %vm108
  %v111 = vsel %vm109, 65537, 0
  %v112 = vsel %vm110, 65537, 0
  %v113 = vunpack.c.l.b16 %v111
  %v114 = vunpack.c.l.b16 %v112
  %v115 = vpack.c.b16 %v114, %v113
  %vm116 = vcmp.ne.s16.totalorder %v115, 0
  %v117 = vsel %vm116, %v95, 0
  %v118 = vsel %vm116, %v96, 0
  %v119 = vrot.slane %v80, 1
  %v120 = vor.u32 %v77, %v119
  %v121 = vrot.slane %v87, 1
  %v122 = vor.u32 %v84, %v121
  %v125 = vpack.c.b16 %v72, %v72
  %v126 = vpack.c.b16 %v73, %v73
  %v128 = vshll.u32 %v125, 16
  %v130 = vrot.slane %v128, 1
  %v132 = vshll.u32 %v126, 16
  %v134 = vrot.slane %v132, 1
  %vm137 = vcmask 1047552
  %vm138 = vsmask.f32 7424
  %vm139 = vmand %vm137, %vm138
  %v140 = vsel %vm139, %v120, %v130
  %v141 = vsel %vm139, %v122, %v134
  %v142 = vadd.s32 %v48, 1
  %v143 = vadd.s32 %v49, 1
  %vm144 = vcmp.ge.s32.totalorder %v142, 0
  %vm145 = vcmp.ge.s32.totalorder %v143, 0
  %vm146 = vcmp.lt.s32.totalorder %v142, 16
  %vm147 = vcmp.lt.s32.totalorder %v143, 16
  %vm148 = vmand %vm144, %vm146
  %vm149 = vmand %vm145, %vm147
  %v150 = vsel %vm148, 1, 0
  %v151 = vsel %vm149, 1, 0
  %vm152 = vcmp.eq.s32.totalorder %v150, 1
  %vm153 = vcmp.eq.s32.totalorder %v151, 1
  %vm154 = vmpackc.low %vm152, %vm152
  %vm155 = vmpackc.low %vm153, %vm153
  %v156 = vsel %vm154, 65537, 0
  %v157 = vsel %vm155, 65537, 0
  %v158 = vunpack.c.l.b16 %v156
  %v159 = vunpack.c.l.b16 %v157
  %v160 = vpack.c.b16 %v159, %v158
  %vm161 = vcmp.ne.s16.totalorder %v160, 0
  %v162 = vsel %vm161, %v140, 0
  %v163 = vsel %vm161, %v141, 0
  %v166 = vld [vmem:[%s1] sm:$0xf]
  %v167 = vld [vmem:[%s1 + $0x4] sm:$0xf]
  %v168 = vld [vmem:[%s1 + $0x8] sm:$0xf]
  %v169 = vld [vmem:[%s1 + $0xc] sm:$0xf]
  %v170 = vld [vmem:[%s1 + $0x10] sm:$0xf]
  %v171 = vld [vmem:[%s1 + $0x14] sm:$0xf]
  %v172 = vld [vmem:[%s1 + $0x18] sm:$0xf]
  %v173 = vld [vmem:[%s1 + $0x1c] sm:$0xf]
  %v174 = vld [vmem:[%s1 + $0x20] sm:$0xf]
  %v175 = vld [vmem:[%s1 + $0x24] sm:$0xf]
  %v176 = vld [vmem:[%s1 + $0x28] sm:$0xf]
  %v177 = vld [vmem:[%s1 + $0x2c] sm:$0xf]
  %v178 = vld [vmem:[%s1 + $0x30] sm:$0xf]
  %v179 = vld [vmem:[%s1 + $0x34] sm:$0xf]
  %v180 = vld [vmem:[%s1 + $0x38] sm:$0xf]
  %v181 = vld [vmem:[%s1 + $0x3c] sm:$0xf]
  %v182 = vld [vmem:[%s1 + $0x40] sm:$0xf]
  %v183 = vld [vmem:[%s1 + $0x44] sm:$0xf]
  %v184 = vld [vmem:[%s1 + $0x48] sm:$0xf]
  %v185 = vld [vmem:[%s1 + $0x4c] sm:$0xf]
  %v186 = vld [vmem:[%s1 + $0x50] sm:$0xf]
  %v187 = vld [vmem:[%s1 + $0x54] sm:$0xf]
  %v188 = vld [vmem:[%s1 + $0x58] sm:$0xf]
  %v189 = vld [vmem:[%s1 + $0x5c] sm:$0xf]
  %v190 = vld [vmem:[%s1 + $0x60] sm:$0xf]
  %v191 = vld [vmem:[%s1 + $0x64] sm:$0xf]
  %v192 = vld [vmem:[%s1 + $0x68] sm:$0xf]
  %v193 = vld [vmem:[%s1 + $0x6c] sm:$0xf]
  %v194 = vld [vmem:[%s1 + $0x70] sm:$0xf]
  %v195 = vld [vmem:[%s1 + $0x74] sm:$0xf]
  %v196 = vld [vmem:[%s1 + $0x78] sm:$0xf]
  %v197 = vld [vmem:[%s1 + $0x7c] sm:$0xf]
  %v198 = vld [vmem:[%s1 + $0x80] sm:$0xf]
  %v199 = vld [vmem:[%s1 + $0x84] sm:$0xf]
  %v200 = vld [vmem:[%s1 + $0x88] sm:$0xf]
  %v201 = vld [vmem:[%s1 + $0x8c] sm:$0xf]
  %v202 = vld [vmem:[%s1 + $0x90] sm:$0xf]
  %v203 = vld [vmem:[%s1 + $0x94] sm:$0xf]
  %v204 = vld [vmem:[%s1 + $0x98] sm:$0xf]
  %v205 = vld [vmem:[%s1 + $0x9c] sm:$0xf]
  %v206 = vld [vmem:[%s1 + $0xa0] sm:$0xf]
  %v207 = vld [vmem:[%s1 + $0xa4] sm:$0xf]
  %v208 = vld [vmem:[%s1 + $0xa8] sm:$0xf]
  %v209 = vld [vmem:[%s1 + $0xac] sm:$0xf]
  %v210 = vld [vmem:[%s1 + $0xb0] sm:$0xf]
  %v211 = vld [vmem:[%s1 + $0xb4] sm:$0xf]
  %v212 = vld [vmem:[%s1 + $0xb8] sm:$0xf]
  %v213 = vld [vmem:[%s1 + $0xbc] sm:$0xf]
  %v262 = vunpack.c.l.b16 %v166
  %v263 = vunpack.c.l.b16 %v167
  %v264 = vunpack.c.l.b16 %v168
  %v265 = vunpack.c.l.b16 %v169
  %v266 = vunpack.c.l.b16 %v170
  %v267 = vunpack.c.l.b16 %v171
  %v268 = vunpack.c.l.b16 %v172
  %v269 = vunpack.c.l.b16 %v173
  %v270 = vunpack.c.l.b16 %v174
  %v271 = vunpack.c.l.b16 %v175
  %v272 = vunpack.c.l.b16 %v176
  %v273 = vunpack.c.l.b16 %v177
  %v274 = vunpack.c.l.b16 %v178
  %v275 = vunpack.c.l.b16 %v179
  %v276 = vunpack.c.l.b16 %v180
  %v277 = vunpack.c.l.b16 %v181
  %v278 = vunpack.c.l.b16 %v182
  %v279 = vunpack.c.l.b16 %v183
  %v280 = vunpack.c.l.b16 %v184
  %v281 = vunpack.c.l.b16 %v185
  %v282 = vunpack.c.l.b16 %v186
  %v283 = vunpack.c.l.b16 %v187
  %v284 = vunpack.c.l.b16 %v188
  %v285 = vunpack.c.l.b16 %v189
  %v286 = vunpack.c.l.b16 %v190
  %v287 = vunpack.c.l.b16 %v191
  %v288 = vunpack.c.l.b16 %v192
  %v289 = vunpack.c.l.b16 %v193
  %v290 = vunpack.c.l.b16 %v194
  %v291 = vunpack.c.l.b16 %v195
  %v292 = vunpack.c.l.b16 %v196
  %v293 = vunpack.c.l.b16 %v197
  %v294 = vunpack.c.l.b16 %v198
  %v295 = vunpack.c.l.b16 %v199
  %v296 = vunpack.c.l.b16 %v200
  %v297 = vunpack.c.l.b16 %v201
  %v298 = vunpack.c.l.b16 %v202
  %v299 = vunpack.c.l.b16 %v203
  %v300 = vunpack.c.l.b16 %v204
  %v301 = vunpack.c.l.b16 %v205
  %v302 = vunpack.c.l.b16 %v206
  %v303 = vunpack.c.l.b16 %v207
  %v304 = vunpack.c.l.b16 %v208
  %v305 = vunpack.c.l.b16 %v209
  %v306 = vunpack.c.l.b16 %v210
  %v307 = vunpack.c.l.b16 %v211
  %v308 = vunpack.c.l.b16 %v212
  %v309 = vunpack.c.l.b16 %v213
  %v310 = vpack.c.b16 %v263, %v262
  %v311 = vpack.c.b16 %v265, %v264
  %v312 = vpack.c.b16 %v267, %v266
  %v313 = vpack.c.b16 %v269, %v268
  %v314 = vpack.c.b16 %v271, %v270
  %v315 = vpack.c.b16 %v273, %v272
  %v316 = vpack.c.b16 %v275, %v274
  %v317 = vpack.c.b16 %v277, %v276
  %v318 = vpack.c.b16 %v279, %v278
  %v319 = vpack.c.b16 %v281, %v280
  %v320 = vpack.c.b16 %v283, %v282
  %v321 = vpack.c.b16 %v285, %v284
  %v322 = vpack.c.b16 %v287, %v286
  %v323 = vpack.c.b16 %v289, %v288
  %v324 = vpack.c.b16 %v291, %v290
  %v325 = vpack.c.b16 %v293, %v292
  %v326 = vpack.c.b16 %v295, %v294
  %v327 = vpack.c.b16 %v297, %v296
  %v328 = vpack.c.b16 %v299, %v298
  %v329 = vpack.c.b16 %v301, %v300
  %v330 = vpack.c.b16 %v303, %v302
  %v331 = vpack.c.b16 %v305, %v304
  %v332 = vpack.c.b16 %v307, %v306
  %v333 = vpack.c.b16 %v309, %v308
  %358 = vmatprep.subr.bf16.mxu0 0
  %359 = vmatpush1.bf16.msra.mxu0 %v310
  %360 = vmatprep.subr.bf16.mxu0 0
  %361 = vmatpush1.bf16.msra.mxu0 %v311
  %362 = vmatprep.subr.bf16.mxu0 0
  %363 = vmatpush1.bf16.msra.mxu0 %v312
  %364 = vmatprep.subr.bf16.mxu0 0
  %365 = vmatpush1.bf16.msra.mxu0 %v313
  %366 = vmatprep.subr.bf16.mxu0 0
  %367 = vmatpush1.bf16.msra.mxu0 %v314
  %368 = vmatprep.subr.bf16.mxu0 0
  %369 = vmatpush1.bf16.msra.mxu0 %v315
  %370 = vmatprep.subr.bf16.mxu0 0
  %371 = vmatpush1.bf16.msra.mxu0 %v316
  %372 = vmatprep.subr.bf16.mxu0 0
  %373 = vmatpush1.bf16.msra.mxu0 %v317
  %374 = vmatprep.subr.bf16.mxu0 0
  %375 = vmatpush1.bf16.msra.mxu0 %v318
  %376 = vmatprep.subr.bf16.mxu0 0
  %377 = vmatpush1.bf16.msra.mxu0 %v319
  %378 = vmatprep.subr.bf16.mxu0 0
  %379 = vmatpush1.bf16.msra.mxu0 %v320
  %380 = vmatprep.subr.bf16.mxu0 0
  %381 = vmatpush1.bf16.msra.mxu0 %v321
  %382 = vmatprep.subr.bf16.mxu0 0
  %383 = vmatpush1.bf16.msra.mxu0 %v322
  %384 = vmatprep.subr.bf16.mxu0 0
  %385 = vmatpush1.bf16.msra.mxu0 %v323
  %386 = vmatprep.subr.bf16.mxu0 0
  %387 = vmatpush1.bf16.msra.mxu0 %v324
  %388 = vmatprep.subr.bf16.mxu0 0
  %389 = vmatpush1.bf16.msra.mxu0 %v325
  %390 = vmatprep.mubr.bf16.mxu0 %v74
  %391 = vmatmul.mubr.bf16.gmra.mrb[0].mxu0 %v117
  %v392 = vpop.f32.mrb[0].mxu0
  %v393 = vadd.f32 0.0, %v392
  %v394 = vpop.f32.mrb[0].mxu0
  %v395 = vpop.f32.mrb[0].mxu0
  %v396 = vadd.f32 0.0, %v395
  %v397 = vpop.f32.mrb[0].mxu0
  %398 = vmatprep.mubr.bf16.mxu0 %v75
  %399 = vmatmul.mubr.bf16.gmra.mrb[0].mxu0 %v118
  %v400 = vpop.f32.mrb[0].mxu0
  %v401 = vadd.f32 0.0, %v400
  %v402 = vpop.f32.mrb[0].mxu0
  %v403 = vpop.f32.mrb[0].mxu0
  %v404 = vadd.f32 0.0, %v403
  %v405 = vpop.f32.mrb[0].mxu0
  %406 = vdwg.mxu0
  %407 = vmatprep.subr.bf16.mxu0 0
  %408 = vmatpush1.bf16.msra.mxu0 %v326
  %409 = vmatprep.subr.bf16.mxu0 0
  %410 = vmatpush1.bf16.msra.mxu0 %v327
  %411 = vmatprep.subr.bf16.mxu0 0
  %412 = vmatpush1.bf16.msra.mxu0 %v328
  %413 = vmatprep.subr.bf16.mxu0 0
  %414 = vmatpush1.bf16.msra.mxu0 %v329
  %415 = vmatprep.subr.bf16.mxu0 0
  %416 = vmatpush1.bf16.msra.mxu0 %v330
  %417 = vmatprep.subr.bf16.mxu0 0
  %418 = vmatpush1.bf16.msra.mxu0 %v331
  %419 = vmatprep.subr.bf16.mxu0 0
  %420 = vmatpush1.bf16.msra.mxu0 %v332
  %421 = vmatprep.subr.bf16.mxu0 0
  %422 = vmatpush1.bf16.msra.mxu0 %v333
  %423 = vmatprep.subr.bf16.mxu0 0
  %424 = vmatpush1.bf16.msra.mxu0 0
  %425 = vmatprep.subr.bf16.mxu0 0
  %426 = vmatpush1.bf16.msra.mxu0 0
  %427 = vmatprep.subr.bf16.mxu0 0
  %428 = vmatpush1.bf16.msra.mxu0 0
  %429 = vmatprep.subr.bf16.mxu0 0
  %430 = vmatpush1.bf16.msra.mxu0 0
  %431 = vmatprep.subr.bf16.mxu0 0
  %432 = vmatpush1.bf16.msra.mxu0 0
  %433 = vmatprep.subr.bf16.mxu0 0
  %434 = vmatpush1.bf16.msra.mxu0 0
  %435 = vmatprep.subr.bf16.mxu0 0
  %436 = vmatpush1.bf16.msra.mxu0 0
  %437 = vmatprep.subr.bf16.mxu0 0
  %438 = vmatpush1.bf16.msra.mxu0 0
  %439 = vmatprep.mubr.bf16.mxu0 0
  %440 = vmatmul.mubr.bf16.gmra.mrb[0].mxu0 %v162
  %v441 = vpop.f32.mrb[0].mxu0
  %v442 = vadd.f32 %v393, %v441
  %v443 = vpop.f32.mrb[0].mxu0
  %v444 = vpop.f32.mrb[0].mxu0
  %v445 = vadd.f32 %v396, %v444
  %v446 = vpop.f32.mrb[0].mxu0
  %447 = vmatprep.mubr.bf16.mxu0 0
  %448 = vmatmul.mubr.bf16.gmra.mrb[0].mxu0 %v163
  %v449 = vpop.f32.mrb[0].mxu0
  %v450 = vadd.f32 %v401, %v449
  %v451 = vpop.f32.mrb[0].mxu0
  %v452 = vpop.f32.mrb[0].mxu0
  %v453 = vadd.f32 %v404, %v452
  %v454 = vpop.f32.mrb[0].mxu0
  %455 = vdwg.mxu0
  %v456 = vmul.f32 %v442, %v442
  %v457 = vmul.f32 %v445, %v445
  %v458 = vmul.f32 %v450, %v450
  %v459 = vmul.f32 %v453, %v453
  %460 = vadd.xlane.f32.xlu0 %v456
  %v461 = vpop.xlane.xlu0 %460
  %462 = vadd.xlane.f32.xlu0 %v457
  %v463 = vpop.xlane.xlu0 %462
  %464 = vadd.xlane.f32.xlu0 %v458
  %v465 = vpop.xlane.xlu0 %464
  %466 = vadd.xlane.f32.xlu0 %v459
  %v467 = vpop.xlane.xlu0 %466
  %v468 = vmul.f32 %v461, 0.03125
  %v469 = vmul.f32 %v463, 0.03125
  %v470 = vmul.f32 %v465, 0.03125
  %v471 = vmul.f32 %v467, 0.03125
  %v472 = vadd.f32 %v468, 1e-06
  %v473 = vadd.f32 %v469, 1e-06
  %v474 = vadd.f32 %v470, 1e-06
  %v475 = vadd.f32 %v471, 1e-06
  %v476 = vrsqrt.pop %v472
  %v477 = vrsqrt.pop %v473
  %v478 = vrsqrt.pop %v474
  %v479 = vrsqrt.pop %v475
  %v480 = vmul.f32 %v442, %v476
  %v481 = vmul.f32 %v445, %v477
  %v482 = vmul.f32 %v450, %v478
  %v483 = vmul.f32 %v453, %v479
  %v484 = vld [vmem:[%s2] sm:$0x1]
  %v486 = vlaneseq
  %v487 = vshrl.u32 %v486, 7
  %v488 = vsub.s32 0, %v487
  %v489 = vrot.slane %v484, %v488
  %v491 = vmul.f32 %v480, %v489
  %v492 = vmul.f32 %v481, %v489
  %v493 = vmul.f32 %v482, %v489
  %v494 = vmul.f32 %v483, %v489
  %v495 = vxor.u32 %v491, 2147483648
  %v496 = vxor.u32 %v492, 2147483648
  %v497 = vxor.u32 %v493, 2147483648
  %v498 = vxor.u32 %v494, 2147483648
  %v499 = vmul.f32 %v495, 1.442695
  %v500 = vpow.pop %v499
  %v501 = vmul.f32 %v496, 1.442695
  %v502 = vpow.pop %v501
  %v503 = vmul.f32 %v497, 1.442695
  %v504 = vpow.pop %v503
  %v505 = vmul.f32 %v498, 1.442695
  %v506 = vpow.pop %v505
  %v507 = vadd.f32 %v500, 1.0
  %v508 = vadd.f32 %v502, 1.0
  %v509 = vadd.f32 %v504, 1.0
  %v510 = vadd.f32 %v506, 1.0
  %v511 = vrcp.pop %v507
  %v512 = vmul.f32 1.0, %v511
  %v513 = vrcp.pop %v508
  %v514 = vmul.f32 1.0, %v513
  %v515 = vrcp.pop %v509
  %v516 = vmul.f32 1.0, %v515
  %v517 = vrcp.pop %v510
  %v518 = vmul.f32 1.0, %v517
  %v519 = vmul.f32 %v491, %v512
  %v520 = vmul.f32 %v492, %v514
  %v521 = vmul.f32 %v493, %v516
  %v522 = vmul.f32 %v494, %v518
  %v523 = vpack.c.bf16 %v520, %v519
  %v524 = vpack.c.bf16 %v522, %v521
  %v527 = vrot.slane %v523, 7
  %v528 = vrot.slane %v524, 7
  %vm529 = vcmask 1040384
  %v531 = vsel %vm529, %v527, %v527
  %v534 = vsel %vm529, %v528, %v528
  %v536 = vadd.s32 %v48, 4294967294
  %v537 = vadd.s32 %v49, 4294967294
  %vm538 = vcmp.ge.s32.totalorder %v536, 0
  %vm539 = vcmp.ge.s32.totalorder %v537, 0
  %vm540 = vcmp.lt.s32.totalorder %v536, 16
  %vm541 = vcmp.lt.s32.totalorder %v537, 16
  %vm542 = vmand %vm538, %vm540
  %vm543 = vmand %vm539, %vm541
  %v544 = vsel %vm542, 1, 0
  %v545 = vsel %vm543, 1, 0
  %vm546 = vcmp.eq.s32.totalorder %v544, 1
  %vm547 = vcmp.eq.s32.totalorder %v545, 1
  %vm548 = vmpackc.low %vm546, %vm546
  %vm549 = vmpackc.low %vm547, %vm547
  %v550 = vsel %vm548, 65537, 0
  %v551 = vsel %vm549, 65537, 0
  %v552 = vunpack.c.l.b16 %v550
  %v553 = vunpack.c.l.b16 %v551
  %v554 = vpack.c.b16 %v553, %v552
  %vm555 = vcmp.ne.s16.totalorder %v554, 0
  %v556 = vsel %vm555, %v531, 0
  %v557 = vsel %vm555, %v534, 0
  %v559 = vshrl.u32 %v523, 16
  %v561 = vrot.slane %v559, 7
  %v563 = vshrl.u32 %v524, 16
  %v565 = vrot.slane %v563, 7
  %v568 = vshll.u32 %v523, 16
  %v570 = vor.u32 %v561, %v568
  %v571 = vshll.u32 %v524, 16
  %v573 = vor.u32 %v565, %v571
  %v576 = vsel %vm94, %v561, %v570
  %v577 = vsel %vm94, %v565, %v573
  %v578 = vsel %vm116, %v576, 0
  %v579 = vsel %vm116, %v577, 0
  %v580 = vrot.slane %v568, 1
  %v581 = vor.u32 %v559, %v580
  %v582 = vrot.slane %v571, 1
  %v583 = vor.u32 %v563, %v582
  %v588 = vsel %vm139, %v581, %v580
  %v589 = vsel %vm139, %v583, %v582
  %v590 = vsel %vm161, %v588, 0
  %v591 = vsel %vm161, %v589, 0
  %v592 = vrot.slane %v523, 1
  %v593 = vrot.slane %v524, 1
  %vm594 = vcmask 1046528
  %v596 = vsel %vm594, %v592, %v592
  %v599 = vsel %vm594, %v593, %v593
  %v601 = vadd.s32 %v48, 2
  %v602 = vadd.s32 %v49, 2
  %vm603 = vcmp.ge.s32.totalorder %v601, 0
  %vm604 = vcmp.ge.s32.totalorder %v602, 0
  %vm605 = vcmp.lt.s32.totalorder %v601, 16
  %vm606 = vcmp.lt.s32.totalorder %v602, 16
  %vm607 = vmand %vm603, %vm605
  %vm608 = vmand %vm604, %vm606
  %v609 = vsel %vm607, 1, 0
  %v610 = vsel %vm608, 1, 0
  %vm611 = vcmp.eq.s32.totalorder %v609, 1
  %vm612 = vcmp.eq.s32.totalorder %v610, 1
  %vm613 = vmpackc.low %vm611, %vm611
  %vm614 = vmpackc.low %vm612, %vm612
  %v615 = vsel %vm613, 65537, 0
  %v616 = vsel %vm614, 65537, 0
  %v617 = vunpack.c.l.b16 %v615
  %v618 = vunpack.c.l.b16 %v616
  %v619 = vpack.c.b16 %v618, %v617
  %vm620 = vcmp.ne.s16.totalorder %v619, 0
  %v621 = vsel %vm620, %v596, 0
  %v622 = vsel %vm620, %v599, 0
  %v623 = vld [vmem:[%s3] sm:$0xf]
  %v624 = vld [vmem:[%s3 + $0x4] sm:$0xf]
  %v625 = vld [vmem:[%s3 + $0x8] sm:$0xf]
  %v626 = vld [vmem:[%s3 + $0xc] sm:$0xf]
  %v627 = vld [vmem:[%s3 + $0x10] sm:$0xf]
  %v628 = vld [vmem:[%s3 + $0x14] sm:$0xf]
  %v629 = vld [vmem:[%s3 + $0x18] sm:$0xf]
  %v630 = vld [vmem:[%s3 + $0x1c] sm:$0xf]
  %v631 = vld [vmem:[%s3 + $0x20] sm:$0xf]
  %v632 = vld [vmem:[%s3 + $0x24] sm:$0xf]
  %v633 = vld [vmem:[%s3 + $0x28] sm:$0xf]
  %v634 = vld [vmem:[%s3 + $0x2c] sm:$0xf]
  %v635 = vld [vmem:[%s3 + $0x30] sm:$0xf]
  %v636 = vld [vmem:[%s3 + $0x34] sm:$0xf]
  %v637 = vld [vmem:[%s3 + $0x38] sm:$0xf]
  %v638 = vld [vmem:[%s3 + $0x3c] sm:$0xf]
  %v639 = vld [vmem:[%s3 + $0x40] sm:$0xf]
  %v640 = vld [vmem:[%s3 + $0x44] sm:$0xf]
  %v641 = vld [vmem:[%s3 + $0x48] sm:$0xf]
  %v642 = vld [vmem:[%s3 + $0x4c] sm:$0xf]
  %v643 = vld [vmem:[%s3 + $0x50] sm:$0xf]
  %v644 = vld [vmem:[%s3 + $0x54] sm:$0xf]
  %v645 = vld [vmem:[%s3 + $0x58] sm:$0xf]
  %v646 = vld [vmem:[%s3 + $0x5c] sm:$0xf]
  %v647 = vld [vmem:[%s3 + $0x60] sm:$0xf]
  %v648 = vld [vmem:[%s3 + $0x64] sm:$0xf]
  %v649 = vld [vmem:[%s3 + $0x68] sm:$0xf]
  %v650 = vld [vmem:[%s3 + $0x6c] sm:$0xf]
  %v651 = vld [vmem:[%s3 + $0x70] sm:$0xf]
  %v652 = vld [vmem:[%s3 + $0x74] sm:$0xf]
  %v653 = vld [vmem:[%s3 + $0x78] sm:$0xf]
  %v654 = vld [vmem:[%s3 + $0x7c] sm:$0xf]
  %v655 = vld [vmem:[%s3 + $0x80] sm:$0xf]
  %v656 = vld [vmem:[%s3 + $0x84] sm:$0xf]
  %v657 = vld [vmem:[%s3 + $0x88] sm:$0xf]
  %v658 = vld [vmem:[%s3 + $0x8c] sm:$0xf]
  %v659 = vld [vmem:[%s3 + $0x90] sm:$0xf]
  %v660 = vld [vmem:[%s3 + $0x94] sm:$0xf]
  %v661 = vld [vmem:[%s3 + $0x98] sm:$0xf]
  %v662 = vld [vmem:[%s3 + $0x9c] sm:$0xf]
  %v663 = vld [vmem:[%s3 + $0xa0] sm:$0xf]
  %v664 = vld [vmem:[%s3 + $0xa4] sm:$0xf]
  %v665 = vld [vmem:[%s3 + $0xa8] sm:$0xf]
  %v666 = vld [vmem:[%s3 + $0xac] sm:$0xf]
  %v667 = vld [vmem:[%s3 + $0xb0] sm:$0xf]
  %v668 = vld [vmem:[%s3 + $0xb4] sm:$0xf]
  %v669 = vld [vmem:[%s3 + $0xb8] sm:$0xf]
  %v670 = vld [vmem:[%s3 + $0xbc] sm:$0xf]
  %v671 = vld [vmem:[%s3 + $0xc0] sm:$0xf]
  %v672 = vld [vmem:[%s3 + $0xc4] sm:$0xf]
  %v673 = vld [vmem:[%s3 + $0xc8] sm:$0xf]
  %v674 = vld [vmem:[%s3 + $0xcc] sm:$0xf]
  %v675 = vld [vmem:[%s3 + $0xd0] sm:$0xf]
  %v676 = vld [vmem:[%s3 + $0xd4] sm:$0xf]
  %v677 = vld [vmem:[%s3 + $0xd8] sm:$0xf]
  %v678 = vld [vmem:[%s3 + $0xdc] sm:$0xf]
  %v679 = vld [vmem:[%s3 + $0xe0] sm:$0xf]
  %v680 = vld [vmem:[%s3 + $0xe4] sm:$0xf]
  %v681 = vld [vmem:[%s3 + $0xe8] sm:$0xf]
  %v682 = vld [vmem:[%s3 + $0xec] sm:$0xf]
  %v683 = vld [vmem:[%s3 + $0xf0] sm:$0xf]
  %v684 = vld [vmem:[%s3 + $0xf4] sm:$0xf]
  %v685 = vld [vmem:[%s3 + $0xf8] sm:$0xf]
  %v686 = vld [vmem:[%s3 + $0xfc] sm:$0xf]
  %v687 = vld [vmem:[%s3 + $0x100] sm:$0xf]
  %v688 = vld [vmem:[%s3 + $0x104] sm:$0xf]
  %v689 = vld [vmem:[%s3 + $0x108] sm:$0xf]
  %v690 = vld [vmem:[%s3 + $0x10c] sm:$0xf]
  %v691 = vld [vmem:[%s3 + $0x110] sm:$0xf]
  %v692 = vld [vmem:[%s3 + $0x114] sm:$0xf]
  %v693 = vld [vmem:[%s3 + $0x118] sm:$0xf]
  %v694 = vld [vmem:[%s3 + $0x11c] sm:$0xf]
  %v695 = vld [vmem:[%s3 + $0x120] sm:$0xf]
  %v696 = vld [vmem:[%s3 + $0x124] sm:$0xf]
  %v697 = vld [vmem:[%s3 + $0x128] sm:$0xf]
  %v698 = vld [vmem:[%s3 + $0x12c] sm:$0xf]
  %v699 = vld [vmem:[%s3 + $0x130] sm:$0xf]
  %v700 = vld [vmem:[%s3 + $0x134] sm:$0xf]
  %v701 = vld [vmem:[%s3 + $0x138] sm:$0xf]
  %v702 = vld [vmem:[%s3 + $0x13c] sm:$0xf]
  %v703 = vld [vmem:[%s4] sm:$0x1]
  %v705 = vlaneseq
  %v706 = vshrl.u32 %v705, 7
  %v707 = vsub.s32 0, %v706
  %v708 = vrot.slane %v703, %v707
  %v790 = vunpack.c.l.b16 %v623
  %v791 = vunpack.c.l.b16 %v624
  %v792 = vunpack.c.l.b16 %v625
  %v793 = vunpack.c.l.b16 %v626
  %v794 = vunpack.c.l.b16 %v627
  %v795 = vunpack.c.l.b16 %v628
  %v796 = vunpack.c.l.b16 %v629
  %v797 = vunpack.c.l.b16 %v630
  %v798 = vunpack.c.l.b16 %v631
  %v799 = vunpack.c.l.b16 %v632
  %v800 = vunpack.c.l.b16 %v633
  %v801 = vunpack.c.l.b16 %v634
  %v802 = vunpack.c.l.b16 %v635
  %v803 = vunpack.c.l.b16 %v636
  %v804 = vunpack.c.l.b16 %v637
  %v805 = vunpack.c.l.b16 %v638
  %v806 = vunpack.c.l.b16 %v639
  %v807 = vunpack.c.l.b16 %v640
  %v808 = vunpack.c.l.b16 %v641
  %v809 = vunpack.c.l.b16 %v642
  %v810 = vunpack.c.l.b16 %v643
  %v811 = vunpack.c.l.b16 %v644
  %v812 = vunpack.c.l.b16 %v645
  %v813 = vunpack.c.l.b16 %v646
  %v814 = vunpack.c.l.b16 %v647
  %v815 = vunpack.c.l.b16 %v648
  %v816 = vunpack.c.l.b16 %v649
  %v817 = vunpack.c.l.b16 %v650
  %v818 = vunpack.c.l.b16 %v651
  %v819 = vunpack.c.l.b16 %v652
  %v820 = vunpack.c.l.b16 %v653
  %v821 = vunpack.c.l.b16 %v654
  %v822 = vunpack.c.l.b16 %v655
  %v823 = vunpack.c.l.b16 %v656
  %v824 = vunpack.c.l.b16 %v657
  %v825 = vunpack.c.l.b16 %v658
  %v826 = vunpack.c.l.b16 %v659
  %v827 = vunpack.c.l.b16 %v660
  %v828 = vunpack.c.l.b16 %v661
  %v829 = vunpack.c.l.b16 %v662
  %v830 = vunpack.c.l.b16 %v663
  %v831 = vunpack.c.l.b16 %v664
  %v832 = vunpack.c.l.b16 %v665
  %v833 = vunpack.c.l.b16 %v666
  %v834 = vunpack.c.l.b16 %v667
  %v835 = vunpack.c.l.b16 %v668
  %v836 = vunpack.c.l.b16 %v669
  %v837 = vunpack.c.l.b16 %v670
  %v838 = vunpack.c.l.b16 %v671
  %v839 = vunpack.c.l.b16 %v672
  %v840 = vunpack.c.l.b16 %v673
  %v841 = vunpack.c.l.b16 %v674
  %v842 = vunpack.c.l.b16 %v675
  %v843 = vunpack.c.l.b16 %v676
  %v844 = vunpack.c.l.b16 %v677
  %v845 = vunpack.c.l.b16 %v678
  %v846 = vunpack.c.l.b16 %v679
  %v847 = vunpack.c.l.b16 %v680
  %v848 = vunpack.c.l.b16 %v681
  %v849 = vunpack.c.l.b16 %v682
  %v850 = vunpack.c.l.b16 %v683
  %v851 = vunpack.c.l.b16 %v684
  %v852 = vunpack.c.l.b16 %v685
  %v853 = vunpack.c.l.b16 %v686
  %v854 = vunpack.c.l.b16 %v687
  %v855 = vunpack.c.l.b16 %v688
  %v856 = vunpack.c.l.b16 %v689
  %v857 = vunpack.c.l.b16 %v690
  %v858 = vunpack.c.l.b16 %v691
  %v859 = vunpack.c.l.b16 %v692
  %v860 = vunpack.c.l.b16 %v693
  %v861 = vunpack.c.l.b16 %v694
  %v862 = vunpack.c.l.b16 %v695
  %v863 = vunpack.c.l.b16 %v696
  %v864 = vunpack.c.l.b16 %v697
  %v865 = vunpack.c.l.b16 %v698
  %v866 = vunpack.c.l.b16 %v699
  %v867 = vunpack.c.l.b16 %v700
  %v868 = vunpack.c.l.b16 %v701
  %v869 = vunpack.c.l.b16 %v702
  %v870 = vpack.c.b16 %v791, %v790
  %v871 = vpack.c.b16 %v793, %v792
  %v872 = vpack.c.b16 %v795, %v794
  %v873 = vpack.c.b16 %v797, %v796
  %v874 = vpack.c.b16 %v799, %v798
  %v875 = vpack.c.b16 %v801, %v800
  %v876 = vpack.c.b16 %v803, %v802
  %v877 = vpack.c.b16 %v805, %v804
  %v878 = vpack.c.b16 %v807, %v806
  %v879 = vpack.c.b16 %v809, %v808
  %v880 = vpack.c.b16 %v811, %v810
  %v881 = vpack.c.b16 %v813, %v812
  %v882 = vpack.c.b16 %v815, %v814
  %v883 = vpack.c.b16 %v817, %v816
  %v884 = vpack.c.b16 %v819, %v818
  %v885 = vpack.c.b16 %v821, %v820
  %v886 = vpack.c.b16 %v823, %v822
  %v887 = vpack.c.b16 %v825, %v824
  %v888 = vpack.c.b16 %v827, %v826
  %v889 = vpack.c.b16 %v829, %v828
  %v890 = vpack.c.b16 %v831, %v830
  %v891 = vpack.c.b16 %v833, %v832
  %v892 = vpack.c.b16 %v835, %v834
  %v893 = vpack.c.b16 %v837, %v836
  %v894 = vpack.c.b16 %v839, %v838
  %v895 = vpack.c.b16 %v841, %v840
  %v896 = vpack.c.b16 %v843, %v842
  %v897 = vpack.c.b16 %v845, %v844
  %v898 = vpack.c.b16 %v847, %v846
  %v899 = vpack.c.b16 %v849, %v848
  %v900 = vpack.c.b16 %v851, %v850
  %v901 = vpack.c.b16 %v853, %v852
  %v902 = vpack.c.b16 %v855, %v854
  %v903 = vpack.c.b16 %v857, %v856
  %v904 = vpack.c.b16 %v859, %v858
  %v905 = vpack.c.b16 %v861, %v860
  %v906 = vpack.c.b16 %v863, %v862
  %v907 = vpack.c.b16 %v865, %v864
  %v908 = vpack.c.b16 %v867, %v866
  %v909 = vpack.c.b16 %v869, %v868
  %950 = vmatprep.subr.bf16.mxu0 0
  %951 = vmatpush1.bf16.msra.mxu0 %v870
  %952 = vmatprep.subr.bf16.mxu0 0
  %953 = vmatpush1.bf16.msra.mxu0 %v871
  %954 = vmatprep.subr.bf16.mxu0 0
  %955 = vmatpush1.bf16.msra.mxu0 %v872
  %956 = vmatprep.subr.bf16.mxu0 0
  %957 = vmatpush1.bf16.msra.mxu0 %v873
  %958 = vmatprep.subr.bf16.mxu0 0
  %959 = vmatpush1.bf16.msra.mxu0 %v874
  %960 = vmatprep.subr.bf16.mxu0 0
  %961 = vmatpush1.bf16.msra.mxu0 %v875
  %962 = vmatprep.subr.bf16.mxu0 0
  %963 = vmatpush1.bf16.msra.mxu0 %v876
  %964 = vmatprep.subr.bf16.mxu0 0
  %965 = vmatpush1.bf16.msra.mxu0 %v877
  %966 = vmatprep.subr.bf16.mxu0 0
  %967 = vmatpush1.bf16.msra.mxu0 %v878
  %968 = vmatprep.subr.bf16.mxu0 0
  %969 = vmatpush1.bf16.msra.mxu0 %v879
  %970 = vmatprep.subr.bf16.mxu0 0
  %971 = vmatpush1.bf16.msra.mxu0 %v880
  %972 = vmatprep.subr.bf16.mxu0 0
  %973 = vmatpush1.bf16.msra.mxu0 %v881
  %974 = vmatprep.subr.bf16.mxu0 0
  %975 = vmatpush1.bf16.msra.mxu0 %v882
  %976 = vmatprep.subr.bf16.mxu0 0
  %977 = vmatpush1.bf16.msra.mxu0 %v883
  %978 = vmatprep.subr.bf16.mxu0 0
  %979 = vmatpush1.bf16.msra.mxu0 %v884
  %980 = vmatprep.subr.bf16.mxu0 0
  %981 = vmatpush1.bf16.msra.mxu0 %v885
  %982 = vmatprep.mubr.bf16.mxu0 %v578
  %983 = vmatmul.mubr.bf16.gmra.mrb[0].mxu0 %v556
  %v984 = vpop.f32.mrb[0].mxu0
  %v985 = vadd.f32 %v708, %v984
  %v986 = vpop.f32.mrb[0].mxu0
  %v987 = vpop.f32.mrb[0].mxu0
  %v988 = vadd.f32 %v708, %v987
  %v989 = vpop.f32.mrb[0].mxu0
  %990 = vmatprep.mubr.bf16.mxu0 %v579
  %991 = vmatmul.mubr.bf16.gmra.mrb[0].mxu0 %v557
  %v992 = vpop.f32.mrb[0].mxu0
  %v993 = vadd.f32 %v708, %v992
  %v994 = vpop.f32.mrb[0].mxu0
  %v995 = vpop.f32.mrb[0].mxu0
  %v996 = vadd.f32 %v708, %v995
  %v997 = vpop.f32.mrb[0].mxu0
  %998 = vdwg.mxu0
  %999 = vmatprep.subr.bf16.mxu0 0
  %1000 = vmatpush1.bf16.msra.mxu0 %v886
  %1001 = vmatprep.subr.bf16.mxu0 0
  %1002 = vmatpush1.bf16.msra.mxu0 %v887
  %1003 = vmatprep.subr.bf16.mxu0 0
  %1004 = vmatpush1.bf16.msra.mxu0 %v888
  %1005 = vmatprep.subr.bf16.mxu0 0
  %1006 = vmatpush1.bf16.msra.mxu0 %v889
  %1007 = vmatprep.subr.bf16.mxu0 0
  %1008 = vmatpush1.bf16.msra.mxu0 %v890
  %1009 = vmatprep.subr.bf16.mxu0 0
  %1010 = vmatpush1.bf16.msra.mxu0 %v891
  %1011 = vmatprep.subr.bf16.mxu0 0
  %1012 = vmatpush1.bf16.msra.mxu0 %v892
  %1013 = vmatprep.subr.bf16.mxu0 0
  %1014 = vmatpush1.bf16.msra.mxu0 %v893
  %1015 = vmatprep.subr.bf16.mxu0 0
  %1016 = vmatpush1.bf16.msra.mxu0 %v894
  %1017 = vmatprep.subr.bf16.mxu0 0
  %1018 = vmatpush1.bf16.msra.mxu0 %v895
  %1019 = vmatprep.subr.bf16.mxu0 0
  %1020 = vmatpush1.bf16.msra.mxu0 %v896
  %1021 = vmatprep.subr.bf16.mxu0 0
  %1022 = vmatpush1.bf16.msra.mxu0 %v897
  %1023 = vmatprep.subr.bf16.mxu0 0
  %1024 = vmatpush1.bf16.msra.mxu0 %v898
  %1025 = vmatprep.subr.bf16.mxu0 0
  %1026 = vmatpush1.bf16.msra.mxu0 %v899
  %1027 = vmatprep.subr.bf16.mxu0 0
  %1028 = vmatpush1.bf16.msra.mxu0 %v900
  %1029 = vmatprep.subr.bf16.mxu0 0
  %1030 = vmatpush1.bf16.msra.mxu0 %v901
  %1031 = vmatprep.mubr.bf16.mxu0 %v590
  %1032 = vmatmul.mubr.bf16.gmra.mrb[0].mxu0 %v523
  %v1033 = vpop.f32.mrb[0].mxu0
  %v1034 = vadd.f32 %v985, %v1033
  %v1035 = vpop.f32.mrb[0].mxu0
  %v1036 = vpop.f32.mrb[0].mxu0
  %v1037 = vadd.f32 %v988, %v1036
  %v1038 = vpop.f32.mrb[0].mxu0
  %1039 = vmatprep.mubr.bf16.mxu0 %v591
  %1040 = vmatmul.mubr.bf16.gmra.mrb[0].mxu0 %v524
  %v1041 = vpop.f32.mrb[0].mxu0
  %v1042 = vadd.f32 %v993, %v1041
  %v1043 = vpop.f32.mrb[0].mxu0
  %v1044 = vpop.f32.mrb[0].mxu0
  %v1045 = vadd.f32 %v996, %v1044
  %v1046 = vpop.f32.mrb[0].mxu0
  %1047 = vdwg.mxu0
  %1048 = vmatprep.subr.bf16.mxu0 0
  %1049 = vmatpush1.bf16.msra.mxu0 %v902
  %1050 = vmatprep.subr.bf16.mxu0 0
  %1051 = vmatpush1.bf16.msra.mxu0 %v903
  %1052 = vmatprep.subr.bf16.mxu0 0
  %1053 = vmatpush1.bf16.msra.mxu0 %v904
  %1054 = vmatprep.subr.bf16.mxu0 0
  %1055 = vmatpush1.bf16.msra.mxu0 %v905
  %1056 = vmatprep.subr.bf16.mxu0 0
  %1057 = vmatpush1.bf16.msra.mxu0 %v906
  %1058 = vmatprep.subr.bf16.mxu0 0
  %1059 = vmatpush1.bf16.msra.mxu0 %v907
  %1060 = vmatprep.subr.bf16.mxu0 0
  %1061 = vmatpush1.bf16.msra.mxu0 %v908
  %1062 = vmatprep.subr.bf16.mxu0 0
  %1063 = vmatpush1.bf16.msra.mxu0 %v909
  %1064 = vmatprep.subr.bf16.mxu0 0
  %1065 = vmatpush1.bf16.msra.mxu0 0
  %1066 = vmatprep.subr.bf16.mxu0 0
  %1067 = vmatpush1.bf16.msra.mxu0 0
  %1068 = vmatprep.subr.bf16.mxu0 0
  %1069 = vmatpush1.bf16.msra.mxu0 0
  %1070 = vmatprep.subr.bf16.mxu0 0
  %1071 = vmatpush1.bf16.msra.mxu0 0
  %1072 = vmatprep.subr.bf16.mxu0 0
  %1073 = vmatpush1.bf16.msra.mxu0 0
  %1074 = vmatprep.subr.bf16.mxu0 0
  %1075 = vmatpush1.bf16.msra.mxu0 0
  %1076 = vmatprep.subr.bf16.mxu0 0
  %1077 = vmatpush1.bf16.msra.mxu0 0
  %1078 = vmatprep.subr.bf16.mxu0 0
  %1079 = vmatpush1.bf16.msra.mxu0 0
  %1080 = vmatprep.mubr.bf16.mxu0 0
  %1081 = vmatmul.mubr.bf16.gmra.mrb[0].mxu0 %v621
  %v1082 = vpop.f32.mrb[0].mxu0
  %v1083 = vadd.f32 %v1034, %v1082
  %v1084 = vpop.f32.mrb[0].mxu0
  %v1085 = vpop.f32.mrb[0].mxu0
  %v1086 = vadd.f32 %v1037, %v1085
  %v1087 = vpop.f32.mrb[0].mxu0
  %1088 = vmatprep.mubr.bf16.mxu0 0
  %1089 = vmatmul.mubr.bf16.gmra.mrb[0].mxu0 %v622
  %v1090 = vpop.f32.mrb[0].mxu0
  %v1091 = vadd.f32 %v1042, %v1090
  %v1092 = vpop.f32.mrb[0].mxu0
  %v1093 = vpop.f32.mrb[0].mxu0
  %v1094 = vadd.f32 %v1045, %v1093
  %v1095 = vpop.f32.mrb[0].mxu0
  %1096 = vdwg.mxu0
  %v1097 = vmul.f32 %v1083, %v1083
  %v1098 = vmul.f32 %v1086, %v1086
  %v1099 = vmul.f32 %v1091, %v1091
  %v1100 = vmul.f32 %v1094, %v1094
  %1101 = vadd.xlane.f32.xlu0 %v1097
  %v1102 = vpop.xlane.xlu0 %1101
  %1103 = vadd.xlane.f32.xlu0 %v1098
  %v1104 = vpop.xlane.xlu0 %1103
  %1105 = vadd.xlane.f32.xlu0 %v1099
  %v1106 = vpop.xlane.xlu0 %1105
  %1107 = vadd.xlane.f32.xlu0 %v1100
  %v1108 = vpop.xlane.xlu0 %1107
  %v1109 = vmul.f32 %v1102, 0.03125
  %v1110 = vmul.f32 %v1104, 0.03125
  %v1111 = vmul.f32 %v1106, 0.03125
  %v1112 = vmul.f32 %v1108, 0.03125
  %v1113 = vadd.f32 %v1109, 1e-06
  %v1114 = vadd.f32 %v1110, 1e-06
  %v1115 = vadd.f32 %v1111, 1e-06
  %v1116 = vadd.f32 %v1112, 1e-06
  %v1117 = vrsqrt.pop %v1113
  %v1118 = vrsqrt.pop %v1114
  %v1119 = vrsqrt.pop %v1115
  %v1120 = vrsqrt.pop %v1116
  %v1121 = vmul.f32 %v1083, %v1117
  %v1122 = vmul.f32 %v1086, %v1118
  %v1123 = vmul.f32 %v1091, %v1119
  %v1124 = vmul.f32 %v1094, %v1120
  %v1125 = vld [vmem:[%s5] sm:$0x1]
  %v1127 = vlaneseq
  %v1128 = vshrl.u32 %v1127, 7
  %v1129 = vsub.s32 0, %v1128
  %v1130 = vrot.slane %v1125, %v1129
  %v1132 = vmul.f32 %v1121, %v1130
  %v1133 = vmul.f32 %v1122, %v1130
  %v1134 = vmul.f32 %v1123, %v1130
  %v1135 = vmul.f32 %v1124, %v1130
  %v1136 = vld [vmem:[%s6] sm:$0x1]
  %v1138 = vlaneseq
  %v1139 = vshrl.u32 %v1138, 7
  %v1140 = vsub.s32 0, %v1139
  %v1141 = vrot.slane %v1136, %v1140
  %v1143 = vadd.f32 %v1132, %v1141
  %v1144 = vadd.f32 %v1133, %v1141
  %v1145 = vadd.f32 %v1134, %v1141
  %v1146 = vadd.f32 %v1135, %v1141
  %v1147 = vpack.c.bf16 %v1144, %v1143
  %v1148 = vpack.c.bf16 %v1146, %v1145
  %v1150 = vshrl.u32 %v1147, 16
  %v1152 = vrot.slane %v1150, 7
  %v1154 = vshrl.u32 %v1148, 16
  %v1156 = vrot.slane %v1154, 7
  %v1159 = vshll.u32 %v1147, 16
  %v1161 = vor.u32 %v1152, %v1159
  %v1162 = vshll.u32 %v1148, 16
  %v1164 = vor.u32 %v1156, %v1162
  %v1167 = vsel %vm94, %v1152, %v1161
  %v1168 = vsel %vm94, %v1156, %v1164
  %v1169 = vsel %vm116, %v1167, 0
  %v1170 = vsel %vm116, %v1168, 0
  %v1171 = vrot.slane %v1159, 1
  %v1172 = vor.u32 %v1150, %v1171
  %v1173 = vrot.slane %v1162, 1
  %v1174 = vor.u32 %v1154, %v1173
  %v1179 = vsel %vm139, %v1172, %v1171
  %v1180 = vsel %vm139, %v1174, %v1173
  %v1181 = vsel %vm161, %v1179, 0
  %v1182 = vsel %vm161, %v1180, 0
  %v1183 = vld [vmem:[%s7] sm:$0xf]
  %v1184 = vld [vmem:[%s7 + $0x4] sm:$0xf]
  %v1185 = vld [vmem:[%s7 + $0x8] sm:$0xf]
  %v1186 = vld [vmem:[%s7 + $0xc] sm:$0xf]
  %v1187 = vld [vmem:[%s7 + $0x10] sm:$0xf]
  %v1188 = vld [vmem:[%s7 + $0x14] sm:$0xf]
  %v1189 = vld [vmem:[%s7 + $0x18] sm:$0xf]
  %v1190 = vld [vmem:[%s7 + $0x1c] sm:$0xf]
  %v1191 = vld [vmem:[%s7 + $0x20] sm:$0xf]
  %v1192 = vld [vmem:[%s7 + $0x24] sm:$0xf]
  %v1193 = vld [vmem:[%s7 + $0x28] sm:$0xf]
  %v1194 = vld [vmem:[%s7 + $0x2c] sm:$0xf]
  %v1195 = vld [vmem:[%s7 + $0x30] sm:$0xf]
  %v1196 = vld [vmem:[%s7 + $0x34] sm:$0xf]
  %v1197 = vld [vmem:[%s7 + $0x38] sm:$0xf]
  %v1198 = vld [vmem:[%s7 + $0x3c] sm:$0xf]
  %v1199 = vld [vmem:[%s7 + $0x40] sm:$0xf]
  %v1200 = vld [vmem:[%s7 + $0x44] sm:$0xf]
  %v1201 = vld [vmem:[%s7 + $0x48] sm:$0xf]
  %v1202 = vld [vmem:[%s7 + $0x4c] sm:$0xf]
  %v1203 = vld [vmem:[%s7 + $0x50] sm:$0xf]
  %v1204 = vld [vmem:[%s7 + $0x54] sm:$0xf]
  %v1205 = vld [vmem:[%s7 + $0x58] sm:$0xf]
  %v1206 = vld [vmem:[%s7 + $0x5c] sm:$0xf]
  %v1207 = vld [vmem:[%s7 + $0x60] sm:$0xf]
  %v1208 = vld [vmem:[%s7 + $0x64] sm:$0xf]
  %v1209 = vld [vmem:[%s7 + $0x68] sm:$0xf]
  %v1210 = vld [vmem:[%s7 + $0x6c] sm:$0xf]
  %v1211 = vld [vmem:[%s7 + $0x70] sm:$0xf]
  %v1212 = vld [vmem:[%s7 + $0x74] sm:$0xf]
  %v1213 = vld [vmem:[%s7 + $0x78] sm:$0xf]
  %v1214 = vld [vmem:[%s7 + $0x7c] sm:$0xf]
  %v1215 = vld [vmem:[%s7 + $0x80] sm:$0xf]
  %v1216 = vld [vmem:[%s7 + $0x84] sm:$0xf]
  %v1217 = vld [vmem:[%s7 + $0x88] sm:$0xf]
  %v1218 = vld [vmem:[%s7 + $0x8c] sm:$0xf]
  %v1219 = vld [vmem:[%s7 + $0x90] sm:$0xf]
  %v1220 = vld [vmem:[%s7 + $0x94] sm:$0xf]
  %v1221 = vld [vmem:[%s7 + $0x98] sm:$0xf]
  %v1222 = vld [vmem:[%s7 + $0x9c] sm:$0xf]
  %v1223 = vld [vmem:[%s7 + $0xa0] sm:$0xf]
  %v1224 = vld [vmem:[%s7 + $0xa4] sm:$0xf]
  %v1225 = vld [vmem:[%s7 + $0xa8] sm:$0xf]
  %v1226 = vld [vmem:[%s7 + $0xac] sm:$0xf]
  %v1227 = vld [vmem:[%s7 + $0xb0] sm:$0xf]
  %v1228 = vld [vmem:[%s7 + $0xb4] sm:$0xf]
  %v1229 = vld [vmem:[%s7 + $0xb8] sm:$0xf]
  %v1230 = vld [vmem:[%s7 + $0xbc] sm:$0xf]
  %v1279 = vunpack.c.l.b16 %v1183
  %v1280 = vunpack.c.l.b16 %v1184
  %v1281 = vunpack.c.l.b16 %v1185
  %v1282 = vunpack.c.l.b16 %v1186
  %v1283 = vunpack.c.l.b16 %v1187
  %v1284 = vunpack.c.l.b16 %v1188
  %v1285 = vunpack.c.l.b16 %v1189
  %v1286 = vunpack.c.l.b16 %v1190
  %v1287 = vunpack.c.l.b16 %v1191
  %v1288 = vunpack.c.l.b16 %v1192
  %v1289 = vunpack.c.l.b16 %v1193
  %v1290 = vunpack.c.l.b16 %v1194
  %v1291 = vunpack.c.l.b16 %v1195
  %v1292 = vunpack.c.l.b16 %v1196
  %v1293 = vunpack.c.l.b16 %v1197
  %v1294 = vunpack.c.l.b16 %v1198
  %v1295 = vunpack.c.l.b16 %v1199
  %v1296 = vunpack.c.l.b16 %v1200
  %v1297 = vunpack.c.l.b16 %v1201
  %v1298 = vunpack.c.l.b16 %v1202
  %v1299 = vunpack.c.l.b16 %v1203
  %v1300 = vunpack.c.l.b16 %v1204
  %v1301 = vunpack.c.l.b16 %v1205
  %v1302 = vunpack.c.l.b16 %v1206
  %v1303 = vunpack.c.l.b16 %v1207
  %v1304 = vunpack.c.l.b16 %v1208
  %v1305 = vunpack.c.l.b16 %v1209
  %v1306 = vunpack.c.l.b16 %v1210
  %v1307 = vunpack.c.l.b16 %v1211
  %v1308 = vunpack.c.l.b16 %v1212
  %v1309 = vunpack.c.l.b16 %v1213
  %v1310 = vunpack.c.l.b16 %v1214
  %v1311 = vunpack.c.l.b16 %v1215
  %v1312 = vunpack.c.l.b16 %v1216
  %v1313 = vunpack.c.l.b16 %v1217
  %v1314 = vunpack.c.l.b16 %v1218
  %v1315 = vunpack.c.l.b16 %v1219
  %v1316 = vunpack.c.l.b16 %v1220
  %v1317 = vunpack.c.l.b16 %v1221
  %v1318 = vunpack.c.l.b16 %v1222
  %v1319 = vunpack.c.l.b16 %v1223
  %v1320 = vunpack.c.l.b16 %v1224
  %v1321 = vunpack.c.l.b16 %v1225
  %v1322 = vunpack.c.l.b16 %v1226
  %v1323 = vunpack.c.l.b16 %v1227
  %v1324 = vunpack.c.l.b16 %v1228
  %v1325 = vunpack.c.l.b16 %v1229
  %v1326 = vunpack.c.l.b16 %v1230
  %v1327 = vpack.c.b16 %v1280, %v1279
  %v1328 = vpack.c.b16 %v1282, %v1281
  %v1329 = vpack.c.b16 %v1284, %v1283
  %v1330 = vpack.c.b16 %v1286, %v1285
  %v1331 = vpack.c.b16 %v1288, %v1287
  %v1332 = vpack.c.b16 %v1290, %v1289
  %v1333 = vpack.c.b16 %v1292, %v1291
  %v1334 = vpack.c.b16 %v1294, %v1293
  %v1335 = vpack.c.b16 %v1296, %v1295
  %v1336 = vpack.c.b16 %v1298, %v1297
  %v1337 = vpack.c.b16 %v1300, %v1299
  %v1338 = vpack.c.b16 %v1302, %v1301
  %v1339 = vpack.c.b16 %v1304, %v1303
  %v1340 = vpack.c.b16 %v1306, %v1305
  %v1341 = vpack.c.b16 %v1308, %v1307
  %v1342 = vpack.c.b16 %v1310, %v1309
  %v1343 = vpack.c.b16 %v1312, %v1311
  %v1344 = vpack.c.b16 %v1314, %v1313
  %v1345 = vpack.c.b16 %v1316, %v1315
  %v1346 = vpack.c.b16 %v1318, %v1317
  %v1347 = vpack.c.b16 %v1320, %v1319
  %v1348 = vpack.c.b16 %v1322, %v1321
  %v1349 = vpack.c.b16 %v1324, %v1323
  %v1350 = vpack.c.b16 %v1326, %v1325
  %1375 = vmatprep.subr.bf16.mxu0 0
  %1376 = vmatpush1.bf16.msra.mxu0 %v1327
  %1377 = vmatprep.subr.bf16.mxu0 0
  %1378 = vmatpush1.bf16.msra.mxu0 %v1328
  %1379 = vmatprep.subr.bf16.mxu0 0
  %1380 = vmatpush1.bf16.msra.mxu0 %v1329
  %1381 = vmatprep.subr.bf16.mxu0 0
  %1382 = vmatpush1.bf16.msra.mxu0 %v1330
  %1383 = vmatprep.subr.bf16.mxu0 0
  %1384 = vmatpush1.bf16.msra.mxu0 %v1331
  %1385 = vmatprep.subr.bf16.mxu0 0
  %1386 = vmatpush1.bf16.msra.mxu0 %v1332
  %1387 = vmatprep.subr.bf16.mxu0 0
  %1388 = vmatpush1.bf16.msra.mxu0 %v1333
  %1389 = vmatprep.subr.bf16.mxu0 0
  %1390 = vmatpush1.bf16.msra.mxu0 %v1334
  %1391 = vmatprep.subr.bf16.mxu0 0
  %1392 = vmatpush1.bf16.msra.mxu0 %v1335
  %1393 = vmatprep.subr.bf16.mxu0 0
  %1394 = vmatpush1.bf16.msra.mxu0 %v1336
  %1395 = vmatprep.subr.bf16.mxu0 0
  %1396 = vmatpush1.bf16.msra.mxu0 %v1337
  %1397 = vmatprep.subr.bf16.mxu0 0
  %1398 = vmatpush1.bf16.msra.mxu0 %v1338
  %1399 = vmatprep.subr.bf16.mxu0 0
  %1400 = vmatpush1.bf16.msra.mxu0 %v1339
  %1401 = vmatprep.subr.bf16.mxu0 0
  %1402 = vmatpush1.bf16.msra.mxu0 %v1340
  %1403 = vmatprep.subr.bf16.mxu0 0
  %1404 = vmatpush1.bf16.msra.mxu0 %v1341
  %1405 = vmatprep.subr.bf16.mxu0 0
  %1406 = vmatpush1.bf16.msra.mxu0 %v1342
  %1407 = vmatprep.mubr.bf16.mxu0 %v1147
  %1408 = vmatmul.mubr.bf16.gmra.mrb[0].mxu0 %v1169
  %v1409 = vpop.f32.mrb[0].mxu0
  %v1410 = vadd.f32 0.0, %v1409
  %v1411 = vpop.f32.mrb[0].mxu0
  %v1412 = vpop.f32.mrb[0].mxu0
  %v1413 = vadd.f32 0.0, %v1412
  %v1414 = vpop.f32.mrb[0].mxu0
  %1415 = vmatprep.mubr.bf16.mxu0 %v1148
  %1416 = vmatmul.mubr.bf16.gmra.mrb[0].mxu0 %v1170
  %v1417 = vpop.f32.mrb[0].mxu0
  %v1418 = vadd.f32 0.0, %v1417
  %v1419 = vpop.f32.mrb[0].mxu0
  %v1420 = vpop.f32.mrb[0].mxu0
  %v1421 = vadd.f32 0.0, %v1420
  %v1422 = vpop.f32.mrb[0].mxu0
  %1423 = vdwg.mxu0
  %1424 = vmatprep.subr.bf16.mxu0 0
  %1425 = vmatpush1.bf16.msra.mxu0 %v1343
  %1426 = vmatprep.subr.bf16.mxu0 0
  %1427 = vmatpush1.bf16.msra.mxu0 %v1344
  %1428 = vmatprep.subr.bf16.mxu0 0
  %1429 = vmatpush1.bf16.msra.mxu0 %v1345
  %1430 = vmatprep.subr.bf16.mxu0 0
  %1431 = vmatpush1.bf16.msra.mxu0 %v1346
  %1432 = vmatprep.subr.bf16.mxu0 0
  %1433 = vmatpush1.bf16.msra.mxu0 %v1347
  %1434 = vmatprep.subr.bf16.mxu0 0
  %1435 = vmatpush1.bf16.msra.mxu0 %v1348
  %1436 = vmatprep.subr.bf16.mxu0 0
  %1437 = vmatpush1.bf16.msra.mxu0 %v1349
  %1438 = vmatprep.subr.bf16.mxu0 0
  %1439 = vmatpush1.bf16.msra.mxu0 %v1350
  %1440 = vmatprep.subr.bf16.mxu0 0
  %1441 = vmatpush1.bf16.msra.mxu0 0
  %1442 = vmatprep.subr.bf16.mxu0 0
  %1443 = vmatpush1.bf16.msra.mxu0 0
  %1444 = vmatprep.subr.bf16.mxu0 0
  %1445 = vmatpush1.bf16.msra.mxu0 0
  %1446 = vmatprep.subr.bf16.mxu0 0
  %1447 = vmatpush1.bf16.msra.mxu0 0
  %1448 = vmatprep.subr.bf16.mxu0 0
  %1449 = vmatpush1.bf16.msra.mxu0 0
  %1450 = vmatprep.subr.bf16.mxu0 0
  %1451 = vmatpush1.bf16.msra.mxu0 0
  %1452 = vmatprep.subr.bf16.mxu0 0
  %1453 = vmatpush1.bf16.msra.mxu0 0
  %1454 = vmatprep.subr.bf16.mxu0 0
  %1455 = vmatpush1.bf16.msra.mxu0 0
  %1456 = vmatprep.mubr.bf16.mxu0 0
  %1457 = vmatmul.mubr.bf16.gmra.mrb[0].mxu0 %v1181
  %v1458 = vpop.f32.mrb[0].mxu0
  %v1459 = vadd.f32 %v1410, %v1458
  %v1460 = vpop.f32.mrb[0].mxu0
  %v1461 = vpop.f32.mrb[0].mxu0
  %v1462 = vadd.f32 %v1413, %v1461
  %v1463 = vpop.f32.mrb[0].mxu0
  %1464 = vmatprep.mubr.bf16.mxu0 0
  %1465 = vmatmul.mubr.bf16.gmra.mrb[0].mxu0 %v1182
  %v1466 = vpop.f32.mrb[0].mxu0
  %v1467 = vadd.f32 %v1418, %v1466
  %v1468 = vpop.f32.mrb[0].mxu0
  %v1469 = vpop.f32.mrb[0].mxu0
  %v1470 = vadd.f32 %v1421, %v1469
  %v1471 = vpop.f32.mrb[0].mxu0
  %1472 = vdwg.mxu0
  %v1473 = vmul.f32 %v1459, %v1459
  %v1474 = vmul.f32 %v1462, %v1462
  %v1475 = vmul.f32 %v1467, %v1467
  %v1476 = vmul.f32 %v1470, %v1470
  %1477 = vadd.xlane.f32.xlu0 %v1473
  %v1478 = vpop.xlane.xlu0 %1477
  %1479 = vadd.xlane.f32.xlu0 %v1474
  %v1480 = vpop.xlane.xlu0 %1479
  %1481 = vadd.xlane.f32.xlu0 %v1475
  %v1482 = vpop.xlane.xlu0 %1481
  %1483 = vadd.xlane.f32.xlu0 %v1476
  %v1484 = vpop.xlane.xlu0 %1483
  %v1485 = vmul.f32 %v1478, 0.0625
  %v1486 = vmul.f32 %v1480, 0.0625
  %v1487 = vmul.f32 %v1482, 0.0625
  %v1488 = vmul.f32 %v1484, 0.0625
  %v1489 = vadd.f32 %v1485, 1e-06
  %v1490 = vadd.f32 %v1486, 1e-06
  %v1491 = vadd.f32 %v1487, 1e-06
  %v1492 = vadd.f32 %v1488, 1e-06
  %v1493 = vrsqrt.pop %v1489
  %v1494 = vrsqrt.pop %v1490
  %v1495 = vrsqrt.pop %v1491
  %v1496 = vrsqrt.pop %v1492
  %v1497 = vmul.f32 %v1459, %v1493
  %v1498 = vmul.f32 %v1462, %v1494
  %v1499 = vmul.f32 %v1467, %v1495
  %v1500 = vmul.f32 %v1470, %v1496
  %v1501 = vld [vmem:[%s8] sm:$0x1]
  %v1503 = vlaneseq
  %v1504 = vshrl.u32 %v1503, 7
  %v1505 = vsub.s32 0, %v1504
  %v1506 = vrot.slane %v1501, %v1505
  %v1508 = vmul.f32 %v1497, %v1506
  %v1509 = vmul.f32 %v1498, %v1506
  %v1510 = vmul.f32 %v1499, %v1506
  %v1511 = vmul.f32 %v1500, %v1506
  %v1512 = vxor.u32 %v1508, 2147483648
  %v1513 = vxor.u32 %v1509, 2147483648
  %v1514 = vxor.u32 %v1510, 2147483648
  %v1515 = vxor.u32 %v1511, 2147483648
  %v1516 = vmul.f32 %v1512, 1.442695
  %v1517 = vpow.pop %v1516
  %v1518 = vmul.f32 %v1513, 1.442695
  %v1519 = vpow.pop %v1518
  %v1520 = vmul.f32 %v1514, 1.442695
  %v1521 = vpow.pop %v1520
  %v1522 = vmul.f32 %v1515, 1.442695
  %v1523 = vpow.pop %v1522
  %v1524 = vadd.f32 %v1517, 1.0
  %v1525 = vadd.f32 %v1519, 1.0
  %v1526 = vadd.f32 %v1521, 1.0
  %v1527 = vadd.f32 %v1523, 1.0
  %v1528 = vrcp.pop %v1524
  %v1529 = vmul.f32 1.0, %v1528
  %v1530 = vrcp.pop %v1525
  %v1531 = vmul.f32 1.0, %v1530
  %v1532 = vrcp.pop %v1526
  %v1533 = vmul.f32 1.0, %v1532
  %v1534 = vrcp.pop %v1527
  %v1535 = vmul.f32 1.0, %v1534
  %v1536 = vmul.f32 %v1508, %v1529
  %v1537 = vmul.f32 %v1509, %v1531
  %v1538 = vmul.f32 %v1510, %v1533
  %v1539 = vmul.f32 %v1511, %v1535
  %v1540 = vpack.c.bf16 %v1537, %v1536
  %v1541 = vpack.c.bf16 %v1539, %v1538
  %v1544 = vrot.slane %v1540, 7
  %v1545 = vrot.slane %v1541, 7
  %v1547 = vsel %vm529, %v1544, %v1544
  %v1550 = vsel %vm529, %v1545, %v1545
  %v1552 = vsel %vm555, %v1547, 0
  %v1553 = vsel %vm555, %v1550, 0
  %v1555 = vshrl.u32 %v1540, 16
  %v1557 = vrot.slane %v1555, 7
  %v1559 = vshrl.u32 %v1541, 16
  %v1561 = vrot.slane %v1559, 7
  %v1564 = vshll.u32 %v1540, 16
  %v1566 = vor.u32 %v1557, %v1564
  %v1567 = vshll.u32 %v1541, 16
  %v1569 = vor.u32 %v1561, %v1567
  %v1572 = vsel %vm94, %v1557, %v1566
  %v1573 = vsel %vm94, %v1561, %v1569
  %v1574 = vsel %vm116, %v1572, 0
  %v1575 = vsel %vm116, %v1573, 0
  %v1576 = vrot.slane %v1564, 1
  %v1577 = vor.u32 %v1555, %v1576
  %v1578 = vrot.slane %v1567, 1
  %v1579 = vor.u32 %v1559, %v1578
  %v1584 = vsel %vm139, %v1577, %v1576
  %v1585 = vsel %vm139, %v1579, %v1578
  %v1586 = vsel %vm161, %v1584, 0
  %v1587 = vsel %vm161, %v1585, 0
  %v1588 = vrot.slane %v1540, 1
  %v1589 = vrot.slane %v1541, 1
  %v1591 = vsel %vm594, %v1588, %v1588
  %v1594 = vsel %vm594, %v1589, %v1589
  %v1596 = vsel %vm620, %v1591, 0
  %v1597 = vsel %vm620, %v1594, 0
  %v1598 = vld [vmem:[%s9] sm:$0xf]
  %v1599 = vld [vmem:[%s9 + $0x4] sm:$0xf]
  %v1600 = vld [vmem:[%s9 + $0x8] sm:$0xf]
  %v1601 = vld [vmem:[%s9 + $0xc] sm:$0xf]
  %v1602 = vld [vmem:[%s9 + $0x10] sm:$0xf]
  %v1603 = vld [vmem:[%s9 + $0x14] sm:$0xf]
  %v1604 = vld [vmem:[%s9 + $0x18] sm:$0xf]
  %v1605 = vld [vmem:[%s9 + $0x1c] sm:$0xf]
  %v1606 = vld [vmem:[%s9 + $0x20] sm:$0xf]
  %v1607 = vld [vmem:[%s9 + $0x24] sm:$0xf]
  %v1608 = vld [vmem:[%s9 + $0x28] sm:$0xf]
  %v1609 = vld [vmem:[%s9 + $0x2c] sm:$0xf]
  %v1610 = vld [vmem:[%s9 + $0x30] sm:$0xf]
  %v1611 = vld [vmem:[%s9 + $0x34] sm:$0xf]
  %v1612 = vld [vmem:[%s9 + $0x38] sm:$0xf]
  %v1613 = vld [vmem:[%s9 + $0x3c] sm:$0xf]
  %v1614 = vld [vmem:[%s9 + $0x40] sm:$0xf]
  %v1615 = vld [vmem:[%s9 + $0x44] sm:$0xf]
  %v1616 = vld [vmem:[%s9 + $0x48] sm:$0xf]
  %v1617 = vld [vmem:[%s9 + $0x4c] sm:$0xf]
  %v1618 = vld [vmem:[%s9 + $0x50] sm:$0xf]
  %v1619 = vld [vmem:[%s9 + $0x54] sm:$0xf]
  %v1620 = vld [vmem:[%s9 + $0x58] sm:$0xf]
  %v1621 = vld [vmem:[%s9 + $0x5c] sm:$0xf]
  %v1622 = vld [vmem:[%s9 + $0x60] sm:$0xf]
  %v1623 = vld [vmem:[%s9 + $0x64] sm:$0xf]
  %v1624 = vld [vmem:[%s9 + $0x68] sm:$0xf]
  %v1625 = vld [vmem:[%s9 + $0x6c] sm:$0xf]
  %v1626 = vld [vmem:[%s9 + $0x70] sm:$0xf]
  %v1627 = vld [vmem:[%s9 + $0x74] sm:$0xf]
  %v1628 = vld [vmem:[%s9 + $0x78] sm:$0xf]
  %v1629 = vld [vmem:[%s9 + $0x7c] sm:$0xf]
  %v1630 = vld [vmem:[%s9 + $0x80] sm:$0xf]
  %v1631 = vld [vmem:[%s9 + $0x84] sm:$0xf]
  %v1632 = vld [vmem:[%s9 + $0x88] sm:$0xf]
  %v1633 = vld [vmem:[%s9 + $0x8c] sm:$0xf]
  %v1634 = vld [vmem:[%s9 + $0x90] sm:$0xf]
  %v1635 = vld [vmem:[%s9 + $0x94] sm:$0xf]
  %v1636 = vld [vmem:[%s9 + $0x98] sm:$0xf]
  %v1637 = vld [vmem:[%s9 + $0x9c] sm:$0xf]
  %v1638 = vld [vmem:[%s9 + $0xa0] sm:$0xf]
  %v1639 = vld [vmem:[%s9 + $0xa4] sm:$0xf]
  %v1640 = vld [vmem:[%s9 + $0xa8] sm:$0xf]
  %v1641 = vld [vmem:[%s9 + $0xac] sm:$0xf]
  %v1642 = vld [vmem:[%s9 + $0xb0] sm:$0xf]
  %v1643 = vld [vmem:[%s9 + $0xb4] sm:$0xf]
  %v1644 = vld [vmem:[%s9 + $0xb8] sm:$0xf]
  %v1645 = vld [vmem:[%s9 + $0xbc] sm:$0xf]
  %v1646 = vld [vmem:[%s9 + $0xc0] sm:$0xf]
  %v1647 = vld [vmem:[%s9 + $0xc4] sm:$0xf]
  %v1648 = vld [vmem:[%s9 + $0xc8] sm:$0xf]
  %v1649 = vld [vmem:[%s9 + $0xcc] sm:$0xf]
  %v1650 = vld [vmem:[%s9 + $0xd0] sm:$0xf]
  %v1651 = vld [vmem:[%s9 + $0xd4] sm:$0xf]
  %v1652 = vld [vmem:[%s9 + $0xd8] sm:$0xf]
  %v1653 = vld [vmem:[%s9 + $0xdc] sm:$0xf]
  %v1654 = vld [vmem:[%s9 + $0xe0] sm:$0xf]
  %v1655 = vld [vmem:[%s9 + $0xe4] sm:$0xf]
  %v1656 = vld [vmem:[%s9 + $0xe8] sm:$0xf]
  %v1657 = vld [vmem:[%s9 + $0xec] sm:$0xf]
  %v1658 = vld [vmem:[%s9 + $0xf0] sm:$0xf]
  %v1659 = vld [vmem:[%s9 + $0xf4] sm:$0xf]
  %v1660 = vld [vmem:[%s9 + $0xf8] sm:$0xf]
  %v1661 = vld [vmem:[%s9 + $0xfc] sm:$0xf]
  %v1662 = vld [vmem:[%s9 + $0x100] sm:$0xf]
  %v1663 = vld [vmem:[%s9 + $0x104] sm:$0xf]
  %v1664 = vld [vmem:[%s9 + $0x108] sm:$0xf]
  %v1665 = vld [vmem:[%s9 + $0x10c] sm:$0xf]
  %v1666 = vld [vmem:[%s9 + $0x110] sm:$0xf]
  %v1667 = vld [vmem:[%s9 + $0x114] sm:$0xf]
  %v1668 = vld [vmem:[%s9 + $0x118] sm:$0xf]
  %v1669 = vld [vmem:[%s9 + $0x11c] sm:$0xf]
  %v1670 = vld [vmem:[%s9 + $0x120] sm:$0xf]
  %v1671 = vld [vmem:[%s9 + $0x124] sm:$0xf]
  %v1672 = vld [vmem:[%s9 + $0x128] sm:$0xf]
  %v1673 = vld [vmem:[%s9 + $0x12c] sm:$0xf]
  %v1674 = vld [vmem:[%s9 + $0x130] sm:$0xf]
  %v1675 = vld [vmem:[%s9 + $0x134] sm:$0xf]
  %v1676 = vld [vmem:[%s9 + $0x138] sm:$0xf]
  %v1677 = vld [vmem:[%s9 + $0x13c] sm:$0xf]
  %v1678 = vld [vmem:[%s10] sm:$0x1]
  %v1680 = vlaneseq
  %v1681 = vshrl.u32 %v1680, 7
  %v1682 = vsub.s32 0, %v1681
  %v1683 = vrot.slane %v1678, %v1682
  %v1765 = vunpack.c.l.b16 %v1598
  %v1766 = vunpack.c.l.b16 %v1599
  %v1767 = vunpack.c.l.b16 %v1600
  %v1768 = vunpack.c.l.b16 %v1601
  %v1769 = vunpack.c.l.b16 %v1602
  %v1770 = vunpack.c.l.b16 %v1603
  %v1771 = vunpack.c.l.b16 %v1604
  %v1772 = vunpack.c.l.b16 %v1605
  %v1773 = vunpack.c.l.b16 %v1606
  %v1774 = vunpack.c.l.b16 %v1607
  %v1775 = vunpack.c.l.b16 %v1608
  %v1776 = vunpack.c.l.b16 %v1609
  %v1777 = vunpack.c.l.b16 %v1610
  %v1778 = vunpack.c.l.b16 %v1611
  %v1779 = vunpack.c.l.b16 %v1612
  %v1780 = vunpack.c.l.b16 %v1613
  %v1781 = vunpack.c.l.b16 %v1614
  %v1782 = vunpack.c.l.b16 %v1615
  %v1783 = vunpack.c.l.b16 %v1616
  %v1784 = vunpack.c.l.b16 %v1617
  %v1785 = vunpack.c.l.b16 %v1618
  %v1786 = vunpack.c.l.b16 %v1619
  %v1787 = vunpack.c.l.b16 %v1620
  %v1788 = vunpack.c.l.b16 %v1621
  %v1789 = vunpack.c.l.b16 %v1622
  %v1790 = vunpack.c.l.b16 %v1623
  %v1791 = vunpack.c.l.b16 %v1624
  %v1792 = vunpack.c.l.b16 %v1625
  %v1793 = vunpack.c.l.b16 %v1626
  %v1794 = vunpack.c.l.b16 %v1627
  %v1795 = vunpack.c.l.b16 %v1628
  %v1796 = vunpack.c.l.b16 %v1629
  %v1797 = vunpack.c.l.b16 %v1630
  %v1798 = vunpack.c.l.b16 %v1631
  %v1799 = vunpack.c.l.b16 %v1632
  %v1800 = vunpack.c.l.b16 %v1633
  %v1801 = vunpack.c.l.b16 %v1634
  %v1802 = vunpack.c.l.b16 %v1635
  %v1803 = vunpack.c.l.b16 %v1636
  %v1804 = vunpack.c.l.b16 %v1637
  %v1805 = vunpack.c.l.b16 %v1638
  %v1806 = vunpack.c.l.b16 %v1639
  %v1807 = vunpack.c.l.b16 %v1640
  %v1808 = vunpack.c.l.b16 %v1641
  %v1809 = vunpack.c.l.b16 %v1642
  %v1810 = vunpack.c.l.b16 %v1643
  %v1811 = vunpack.c.l.b16 %v1644
  %v1812 = vunpack.c.l.b16 %v1645
  %v1813 = vunpack.c.l.b16 %v1646
  %v1814 = vunpack.c.l.b16 %v1647
  %v1815 = vunpack.c.l.b16 %v1648
  %v1816 = vunpack.c.l.b16 %v1649
  %v1817 = vunpack.c.l.b16 %v1650
  %v1818 = vunpack.c.l.b16 %v1651
  %v1819 = vunpack.c.l.b16 %v1652
  %v1820 = vunpack.c.l.b16 %v1653
  %v1821 = vunpack.c.l.b16 %v1654
  %v1822 = vunpack.c.l.b16 %v1655
  %v1823 = vunpack.c.l.b16 %v1656
  %v1824 = vunpack.c.l.b16 %v1657
  %v1825 = vunpack.c.l.b16 %v1658
  %v1826 = vunpack.c.l.b16 %v1659
  %v1827 = vunpack.c.l.b16 %v1660
  %v1828 = vunpack.c.l.b16 %v1661
  %v1829 = vunpack.c.l.b16 %v1662
  %v1830 = vunpack.c.l.b16 %v1663
  %v1831 = vunpack.c.l.b16 %v1664
  %v1832 = vunpack.c.l.b16 %v1665
  %v1833 = vunpack.c.l.b16 %v1666
  %v1834 = vunpack.c.l.b16 %v1667
  %v1835 = vunpack.c.l.b16 %v1668
  %v1836 = vunpack.c.l.b16 %v1669
  %v1837 = vunpack.c.l.b16 %v1670
  %v1838 = vunpack.c.l.b16 %v1671
  %v1839 = vunpack.c.l.b16 %v1672
  %v1840 = vunpack.c.l.b16 %v1673
  %v1841 = vunpack.c.l.b16 %v1674
  %v1842 = vunpack.c.l.b16 %v1675
  %v1843 = vunpack.c.l.b16 %v1676
  %v1844 = vunpack.c.l.b16 %v1677
  %v1845 = vpack.c.b16 %v1766, %v1765
  %v1846 = vpack.c.b16 %v1768, %v1767
  %v1847 = vpack.c.b16 %v1770, %v1769
  %v1848 = vpack.c.b16 %v1772, %v1771
  %v1849 = vpack.c.b16 %v1774, %v1773
  %v1850 = vpack.c.b16 %v1776, %v1775
  %v1851 = vpack.c.b16 %v1778, %v1777
  %v1852 = vpack.c.b16 %v1780, %v1779
  %v1853 = vpack.c.b16 %v1782, %v1781
  %v1854 = vpack.c.b16 %v1784, %v1783
  %v1855 = vpack.c.b16 %v1786, %v1785
  %v1856 = vpack.c.b16 %v1788, %v1787
  %v1857 = vpack.c.b16 %v1790, %v1789
  %v1858 = vpack.c.b16 %v1792, %v1791
  %v1859 = vpack.c.b16 %v1794, %v1793
  %v1860 = vpack.c.b16 %v1796, %v1795
  %v1861 = vpack.c.b16 %v1798, %v1797
  %v1862 = vpack.c.b16 %v1800, %v1799
  %v1863 = vpack.c.b16 %v1802, %v1801
  %v1864 = vpack.c.b16 %v1804, %v1803
  %v1865 = vpack.c.b16 %v1806, %v1805
  %v1866 = vpack.c.b16 %v1808, %v1807
  %v1867 = vpack.c.b16 %v1810, %v1809
  %v1868 = vpack.c.b16 %v1812, %v1811
  %v1869 = vpack.c.b16 %v1814, %v1813
  %v1870 = vpack.c.b16 %v1816, %v1815
  %v1871 = vpack.c.b16 %v1818, %v1817
  %v1872 = vpack.c.b16 %v1820, %v1819
  %v1873 = vpack.c.b16 %v1822, %v1821
  %v1874 = vpack.c.b16 %v1824, %v1823
  %v1875 = vpack.c.b16 %v1826, %v1825
  %v1876 = vpack.c.b16 %v1828, %v1827
  %v1877 = vpack.c.b16 %v1830, %v1829
  %v1878 = vpack.c.b16 %v1832, %v1831
  %v1879 = vpack.c.b16 %v1834, %v1833
  %v1880 = vpack.c.b16 %v1836, %v1835
  %v1881 = vpack.c.b16 %v1838, %v1837
  %v1882 = vpack.c.b16 %v1840, %v1839
  %v1883 = vpack.c.b16 %v1842, %v1841
  %v1884 = vpack.c.b16 %v1844, %v1843
  %1925 = vmatprep.subr.bf16.mxu0 0
  %1926 = vmatpush1.bf16.msra.mxu0 %v1845
  %1927 = vmatprep.subr.bf16.mxu0 0
  %1928 = vmatpush1.bf16.msra.mxu0 %v1846
  %1929 = vmatprep.subr.bf16.mxu0 0
  %1930 = vmatpush1.bf16.msra.mxu0 %v1847
  %1931 = vmatprep.subr.bf16.mxu0 0
  %1932 = vmatpush1.bf16.msra.mxu0 %v1848
  %1933 = vmatprep.subr.bf16.mxu0 0
  %1934 = vmatpush1.bf16.msra.mxu0 %v1849
  %1935 = vmatprep.subr.bf16.mxu0 0
  %1936 = vmatpush1.bf16.msra.mxu0 %v1850
  %1937 = vmatprep.subr.bf16.mxu0 0
  %1938 = vmatpush1.bf16.msra.mxu0 %v1851
  %1939 = vmatprep.subr.bf16.mxu0 0
  %1940 = vmatpush1.bf16.msra.mxu0 %v1852
  %1941 = vmatprep.subr.bf16.mxu0 0
  %1942 = vmatpush1.bf16.msra.mxu0 %v1853
  %1943 = vmatprep.subr.bf16.mxu0 0
  %1944 = vmatpush1.bf16.msra.mxu0 %v1854
  %1945 = vmatprep.subr.bf16.mxu0 0
  %1946 = vmatpush1.bf16.msra.mxu0 %v1855
  %1947 = vmatprep.subr.bf16.mxu0 0
  %1948 = vmatpush1.bf16.msra.mxu0 %v1856
  %1949 = vmatprep.subr.bf16.mxu0 0
  %1950 = vmatpush1.bf16.msra.mxu0 %v1857
  %1951 = vmatprep.subr.bf16.mxu0 0
  %1952 = vmatpush1.bf16.msra.mxu0 %v1858
  %1953 = vmatprep.subr.bf16.mxu0 0
  %1954 = vmatpush1.bf16.msra.mxu0 %v1859
  %1955 = vmatprep.subr.bf16.mxu0 0
  %1956 = vmatpush1.bf16.msra.mxu0 %v1860
  %1957 = vmatprep.mubr.bf16.mxu0 %v1574
  %1958 = vmatmul.mubr.bf16.gmra.mrb[0].mxu0 %v1552
  %v1959 = vpop.f32.mrb[0].mxu0
  %v1960 = vadd.f32 %v1683, %v1959
  %v1961 = vpop.f32.mrb[0].mxu0
  %v1962 = vpop.f32.mrb[0].mxu0
  %v1963 = vadd.f32 %v1683, %v1962
  %v1964 = vpop.f32.mrb[0].mxu0
  %1965 = vmatprep.mubr.bf16.mxu0 %v1575
  %1966 = vmatmul.mubr.bf16.gmra.mrb[0].mxu0 %v1553
  %v1967 = vpop.f32.mrb[0].mxu0
  %v1968 = vadd.f32 %v1683, %v1967
  %v1969 = vpop.f32.mrb[0].mxu0
  %v1970 = vpop.f32.mrb[0].mxu0
  %v1971 = vadd.f32 %v1683, %v1970
  %v1972 = vpop.f32.mrb[0].mxu0
  %1973 = vdwg.mxu0
  %1974 = vmatprep.subr.bf16.mxu0 0
  %1975 = vmatpush1.bf16.msra.mxu0 %v1861
  %1976 = vmatprep.subr.bf16.mxu0 0
  %1977 = vmatpush1.bf16.msra.mxu0 %v1862
  %1978 = vmatprep.subr.bf16.mxu0 0
  %1979 = vmatpush1.bf16.msra.mxu0 %v1863
  %1980 = vmatprep.subr.bf16.mxu0 0
  %1981 = vmatpush1.bf16.msra.mxu0 %v1864
  %1982 = vmatprep.subr.bf16.mxu0 0
  %1983 = vmatpush1.bf16.msra.mxu0 %v1865
  %1984 = vmatprep.subr.bf16.mxu0 0
  %1985 = vmatpush1.bf16.msra.mxu0 %v1866
  %1986 = vmatprep.subr.bf16.mxu0 0
  %1987 = vmatpush1.bf16.msra.mxu0 %v1867
  %1988 = vmatprep.subr.bf16.mxu0 0
  %1989 = vmatpush1.bf16.msra.mxu0 %v1868
  %1990 = vmatprep.subr.bf16.mxu0 0
  %1991 = vmatpush1.bf16.msra.mxu0 %v1869
  %1992 = vmatprep.subr.bf16.mxu0 0
  %1993 = vmatpush1.bf16.msra.mxu0 %v1870
  %1994 = vmatprep.subr.bf16.mxu0 0
  %1995 = vmatpush1.bf16.msra.mxu0 %v1871
  %1996 = vmatprep.subr.bf16.mxu0 0
  %1997 = vmatpush1.bf16.msra.mxu0 %v1872
  %1998 = vmatprep.subr.bf16.mxu0 0
  %1999 = vmatpush1.bf16.msra.mxu0 %v1873
  %2000 = vmatprep.subr.bf16.mxu0 0
  %2001 = vmatpush1.bf16.msra.mxu0 %v1874
  %2002 = vmatprep.subr.bf16.mxu0 0
  %2003 = vmatpush1.bf16.msra.mxu0 %v1875
  %2004 = vmatprep.subr.bf16.mxu0 0
  %2005 = vmatpush1.bf16.msra.mxu0 %v1876
  %2006 = vmatprep.mubr.bf16.mxu0 %v1586
  %2007 = vmatmul.mubr.bf16.gmra.mrb[0].mxu0 %v1540
  %v2008 = vpop.f32.mrb[0].mxu0
  %v2009 = vadd.f32 %v1960, %v2008
  %v2010 = vpop.f32.mrb[0].mxu0
  %v2011 = vpop.f32.mrb[0].mxu0
  %v2012 = vadd.f32 %v1963, %v2011
  %v2013 = vpop.f32.mrb[0].mxu0
  %2014 = vmatprep.mubr.bf16.mxu0 %v1587
  %2015 = vmatmul.mubr.bf16.gmra.mrb[0].mxu0 %v1541
  %v2016 = vpop.f32.mrb[0].mxu0
  %v2017 = vadd.f32 %v1968, %v2016
  %v2018 = vpop.f32.mrb[0].mxu0
  %v2019 = vpop.f32.mrb[0].mxu0
  %v2020 = vadd.f32 %v1971, %v2019
  %v2021 = vpop.f32.mrb[0].mxu0
  %2022 = vdwg.mxu0
  %2023 = vmatprep.subr.bf16.mxu0 0
  %2024 = vmatpush1.bf16.msra.mxu0 %v1877
  %2025 = vmatprep.subr.bf16.mxu0 0
  %2026 = vmatpush1.bf16.msra.mxu0 %v1878
  %2027 = vmatprep.subr.bf16.mxu0 0
  %2028 = vmatpush1.bf16.msra.mxu0 %v1879
  %2029 = vmatprep.subr.bf16.mxu0 0
  %2030 = vmatpush1.bf16.msra.mxu0 %v1880
  %2031 = vmatprep.subr.bf16.mxu0 0
  %2032 = vmatpush1.bf16.msra.mxu0 %v1881
  %2033 = vmatprep.subr.bf16.mxu0 0
  %2034 = vmatpush1.bf16.msra.mxu0 %v1882
  %2035 = vmatprep.subr.bf16.mxu0 0
  %2036 = vmatpush1.bf16.msra.mxu0 %v1883
  %2037 = vmatprep.subr.bf16.mxu0 0
  %2038 = vmatpush1.bf16.msra.mxu0 %v1884
  %2039 = vmatprep.subr.bf16.mxu0 0
  %2040 = vmatpush1.bf16.msra.mxu0 0
  %2041 = vmatprep.subr.bf16.mxu0 0
  %2042 = vmatpush1.bf16.msra.mxu0 0
  %2043 = vmatprep.subr.bf16.mxu0 0
  %2044 = vmatpush1.bf16.msra.mxu0 0
  %2045 = vmatprep.subr.bf16.mxu0 0
  %2046 = vmatpush1.bf16.msra.mxu0 0
  %2047 = vmatprep.subr.bf16.mxu0 0
  %2048 = vmatpush1.bf16.msra.mxu0 0
  %2049 = vmatprep.subr.bf16.mxu0 0
  %2050 = vmatpush1.bf16.msra.mxu0 0
  %2051 = vmatprep.subr.bf16.mxu0 0
  %2052 = vmatpush1.bf16.msra.mxu0 0
  %2053 = vmatprep.subr.bf16.mxu0 0
  %2054 = vmatpush1.bf16.msra.mxu0 0
  %2055 = vmatprep.mubr.bf16.mxu0 0
  %2056 = vmatmul.mubr.bf16.gmra.mrb[0].mxu0 %v1596
  %v2057 = vpop.f32.mrb[0].mxu0
  %v2058 = vadd.f32 %v2009, %v2057
  %v2059 = vpop.f32.mrb[0].mxu0
  %v2060 = vpop.f32.mrb[0].mxu0
  %v2061 = vadd.f32 %v2012, %v2060
  %v2062 = vpop.f32.mrb[0].mxu0
  %2063 = vmatprep.mubr.bf16.mxu0 0
  %2064 = vmatmul.mubr.bf16.gmra.mrb[0].mxu0 %v1597
  %v2065 = vpop.f32.mrb[0].mxu0
  %v2066 = vadd.f32 %v2017, %v2065
  %v2067 = vpop.f32.mrb[0].mxu0
  %v2068 = vpop.f32.mrb[0].mxu0
  %v2069 = vadd.f32 %v2020, %v2068
  %v2070 = vpop.f32.mrb[0].mxu0
  %2071 = vdwg.mxu0
  %v2072 = vmul.f32 %v2058, %v2058
  %v2073 = vmul.f32 %v2061, %v2061
  %v2074 = vmul.f32 %v2066, %v2066
  %v2075 = vmul.f32 %v2069, %v2069
  %2076 = vadd.xlane.f32.xlu0 %v2072
  %v2077 = vpop.xlane.xlu0 %2076
  %2078 = vadd.xlane.f32.xlu0 %v2073
  %v2079 = vpop.xlane.xlu0 %2078
  %2080 = vadd.xlane.f32.xlu0 %v2074
  %v2081 = vpop.xlane.xlu0 %2080
  %2082 = vadd.xlane.f32.xlu0 %v2075
  %v2083 = vpop.xlane.xlu0 %2082
  %v2084 = vmul.f32 %v2077, 0.0625
  %v2085 = vmul.f32 %v2079, 0.0625
  %v2086 = vmul.f32 %v2081, 0.0625
  %v2087 = vmul.f32 %v2083, 0.0625
  %v2088 = vadd.f32 %v2084, 1e-06
  %v2089 = vadd.f32 %v2085, 1e-06
  %v2090 = vadd.f32 %v2086, 1e-06
  %v2091 = vadd.f32 %v2087, 1e-06
  %v2092 = vrsqrt.pop %v2088
  %v2093 = vrsqrt.pop %v2089
  %v2094 = vrsqrt.pop %v2090
  %v2095 = vrsqrt.pop %v2091
  %v2096 = vmul.f32 %v2058, %v2092
  %v2097 = vmul.f32 %v2061, %v2093
  %v2098 = vmul.f32 %v2066, %v2094
  %v2099 = vmul.f32 %v2069, %v2095
  %v2100 = vld [vmem:[%s11] sm:$0x1]
  %v2102 = vlaneseq
  %v2103 = vshrl.u32 %v2102, 7
  %v2104 = vsub.s32 0, %v2103
  %v2105 = vrot.slane %v2100, %v2104
  %v2107 = vmul.f32 %v2096, %v2105
  %v2108 = vmul.f32 %v2097, %v2105
  %v2109 = vmul.f32 %v2098, %v2105
  %v2110 = vmul.f32 %v2099, %v2105
  %v2111 = vld [vmem:[%s12] sm:$0x1]
  %v2113 = vlaneseq
  %v2114 = vshrl.u32 %v2113, 7
  %v2115 = vsub.s32 0, %v2114
  %v2116 = vrot.slane %v2111, %v2115
  %v2118 = vadd.f32 %v2107, %v2116
  %v2119 = vadd.f32 %v2108, %v2116
  %v2120 = vadd.f32 %v2109, %v2116
  %v2121 = vadd.f32 %v2110, %v2116
  %v2122 = vpack.c.bf16 %v2119, %v2118
  %v2123 = vpack.c.bf16 %v2121, %v2120
  %v2126 = vunpack.c.l.b16 %v2122
  %v2127 = vunpack.c.h.b16 %v2122
  %v2128 = vunpack.c.l.b16 %v2123
  %v2129 = vunpack.c.h.b16 %v2123
  %v2130 = vpack.c.b16 %v2126, %v2126
  %v2131 = vpack.c.b16 %v2127, %v2127
  %v2132 = vpack.c.b16 %v2128, %v2128
  %v2133 = vpack.c.b16 %v2129, %v2129
  %2138 = vst [vmem:[%s13] sm:$0xf] %v2130
  %2139 = vst [vmem:[%s13 + $0x4] sm:$0xf] %v2131
  %2140 = vst [vmem:[%s13 + $0x8] sm:$0xf] %v2132
  %2141 = vst [vmem:[%s13 + $0xc] sm:$0xf] %v2133
  // Predicated region
  $region54: #{_lambda_.1} parent=0 // pred_check
    _
  $region55: #{_lambda_.1} parent=0 // pred_check_branch
    %2143 = sbr.rel (0) target = $region57
  $region56: #{_lambda_.1} parent=0 // pred_region
    _
  $region57: #{_lambda_.1} parent=0 // pred_fallthru
    _
  // Predicated region
  $region58: #{_lambda_.1} parent=0 // pred_check
    _
  $region59: #{_lambda_.1} parent=0 // pred_check_branch
    %2145 = sbr.rel (0) target = $region61
  $region60: #{_lambda_.1} parent=0 // pred_region
    _
  $region61: #{_lambda_.1} parent=0 // pred_fallthru
    _

</llo_original>
